<compile_context>
chip_gen: v7x
topology: tpu7x:2x2x1
jax: 0.10.0
libtpu: 0.0.40
codegen_flags: <defaults>
</compile_context>

<pallas_src>
import functools

import jax
import jax.numpy as jnp
from jax.experimental import pallas as pl
from jax.experimental.pallas import tpu as pltpu

BN_EPS = 1e-5          # nn.BatchNorm1d default
NORM_EPS = 1e-12       # F.normalize default
_MiB = 1024 * 1024


def _vmem_limit_bytes():
    """Per-generation scoped-VMEM budget (conservative fallback if query fails)."""
    try:
        phys = pltpu.get_tpu_info().vmem_capacity_bytes
        # 128 MiB parts (v5e/v6e) -> 96 MiB budget; 64 MiB (v7x) -> 48 MiB.
        return int(min(phys * 3 // 4, 96 * _MiB))
    except Exception:  # pragma: no cover - defensive: emulator / older jax
        return 32 * _MiB


def _pick_block_b(B, vmem_limit):
    # Prefer large, MXU-friendly (multiple-of-128) batch tiles; go bigger on
    # 128 MiB parts, stay conservative on v7x's 64 MiB VMEM.  Small fallbacks
    # only exist for tiny test batches.
    prefs = (512, 256, 128) if vmem_limit >= 64 * _MiB else (256, 128)
    for tb in prefs + (64, 32, 16, 8):
        if B % tb == 0:
            return tb
    return B  # odd / tiny batch: single full-extent tile


# ----------------------------------------------------------------------------
# Fused single-kernel path: grid = (pass, batch_tile), both "arbitrary".
#   pass 0: h = x @ W1, accumulate per-feature sum/sumsq, park h (bf16) in a
#           persistent VMEM scratch.
#   pass 1 (i == 0): derive BN scale/shift once into VMEM scratch.
#   pass 1: BN FMA -> ReLU -> @W2 + b -> L2 normalize -> out.
# ----------------------------------------------------------------------------
def _fused_kernel(inv_b, x_ref, w1_ref, gamma_ref, beta_ref, w2_ref, b2_ref,
                  o_ref, h_scr, sum_scr, sumsq_scr, scale_scr, shift_scr):
    p = pl.program_id(0)   # 0: matmul1 + stats, 1: BN/ReLU/matmul2/normalize
    i = pl.program_id(1)   # batch tile index

    @pl.when(jnp.logical_and(p == 0, i == 0))
    def _():
        sum_scr[...] = jnp.zeros_like(sum_scr)
        sumsq_scr[...] = jnp.zeros_like(sumsq_scr)

    @pl.when(p == 0)
    def _():
        h = jnp.dot(x_ref[...], w1_ref[...], preferred_element_type=jnp.float32)
        # Stats from the f32 accumulator (before the bf16 cast).
        sum_scr[...] += jnp.sum(h, axis=0, keepdims=True)
        sumsq_scr[...] += jnp.sum(h * h, axis=0, keepdims=True)
        h_scr[i] = h.astype(h_scr.dtype)

    @pl.when(jnp.logical_and(p == 1, i == 0))
    def _():
        # Hoisted: scale/shift computed once, reused by every pass-1 tile.
        mean = sum_scr[...] * inv_b
        var = sumsq_scr[...] * inv_b - mean * mean       # biased (training mode)
        scale = gamma_ref[...] * jax.lax.rsqrt(var + BN_EPS)
        scale_scr[...] = scale
        shift_scr[...] = beta_ref[...] - mean * scale

    @pl.when(p == 1)
    def _():
        a = jnp.maximum(
            h_scr[i].astype(jnp.float32) * scale_scr[...] + shift_scr[...], 0.0)
        y = jnp.dot(a.astype(w2_ref.dtype), w2_ref[...],
                    preferred_element_type=jnp.float32) + b2_ref[...]
        ssq = jnp.sum(y * y, axis=1, keepdims=True)
        # max(sqrt(s), eps) == sqrt(max(s, eps^2)) -> single rsqrt.
        inv_norm = jax.lax.rsqrt(jnp.maximum(ssq, NORM_EPS * NORM_EPS))
        o_ref[...] = (y * inv_norm).astype(o_ref.dtype)


# ----------------------------------------------------------------------------
# Two-phase fallback (huge batches only).
# Phase 1: grid = (split, batch_tile), leading axis "parallel" (megacore).
# Per-split partial stats accumulate into resident (1, H) blocks; h is written
# to HBM in bfloat16 (stats taken from the f32 accumulator first).
# ----------------------------------------------------------------------------
def _stats_kernel(x_ref, w1_ref, h_ref, sum_ref, sumsq_ref):
    @pl.when(pl.program_id(1) == 0)
    def _():
        sum_ref[...] = jnp.zeros_like(sum_ref)
        sumsq_ref[...] = jnp.zeros_like(sumsq_ref)

    h = jnp.dot(x_ref[...], w1_ref[...], preferred_element_type=jnp.float32)
    sum_ref[...] += jnp.sum(h, axis=0, keepdims=True)
    sumsq_ref[...] += jnp.sum(h * h, axis=0, keepdims=True)
    h_ref[...] = h.astype(h_ref.dtype)


# Phase 2: combine per-split stats, BN FMA -> ReLU -> @W2 + b -> L2 normalize.
# scale/shift are recomputed per tile (a few-hundred-lane VPU op + one rsqrt,
# negligible vs. the matmul) because hoisting into scratch is not safe under a
# "parallel" grid axis on megacore.
def _bn_relu_proj_kernel(inv_b, h_ref, sum_ref, sumsq_ref, gamma_ref, beta_ref,
                         w2_ref, b2_ref, o_ref):
    total_sum = jnp.sum(sum_ref[...], axis=0, keepdims=True)      # (1, H)
    total_sumsq = jnp.sum(sumsq_ref[...], axis=0, keepdims=True)  # (1, H)
    mean = total_sum * inv_b
    var = total_sumsq * inv_b - mean * mean                       # biased
    scale = gamma_ref[...] * jax.lax.rsqrt(var + BN_EPS)
    shift = beta_ref[...] - mean * scale

    a = jnp.maximum(h_ref[...].astype(jnp.float32) * scale + shift, 0.0)
    y = jnp.dot(a.astype(w2_ref.dtype), w2_ref[...],
                preferred_element_type=jnp.float32) + b2_ref[...]
    ssq = jnp.sum(y * y, axis=1, keepdims=True)
    inv_norm = jax.lax.rsqrt(jnp.maximum(ssq, NORM_EPS * NORM_EPS))
    o_ref[...] = (y * inv_norm).astype(o_ref.dtype)


@functools.partial(jax.jit, static_argnames=("block_b", "force_two_phase"))
def projection_forward(x, w1, gamma, beta, w2, b2, block_b=None,
                       force_two_phase=False):
    B, d_in = x.shape
    H = w1.shape[1]
    d_out = w2.shape[1]

    vmem_limit = _vmem_limit_bytes()
    if block_b is None:
        block_b = _pick_block_b(B, vmem_limit)
    if B % block_b:
        raise ValueError(f"batch {B} must be divisible by block_b {block_b}")
    nb = B // block_b

    # Mixed precision: MXU operands in bf16 (f32 accumulation); BN / normalize
    # math and small parameters in f32.  Casting here means a caller passing
    # f32 does not pay double HBM traffic for x.
    x_bf = x.astype(jnp.bfloat16)
    w1_bf = w1.astype(jnp.bfloat16)
    w2_bf = w2.astype(jnp.bfloat16)
    gamma2 = gamma.reshape(1, H).astype(jnp.float32)
    beta2 = beta.reshape(1, H).astype(jnp.float32)
    b22 = b2.reshape(1, d_out).astype(jnp.float32)

    vmem = pltpu.MemorySpace.VMEM
    inv_b = 1.0 / B

    # VMEM footprint estimate for the fused path (h scratch + double-buffered
    # streaming operands + resident weights/params).
    fused_bytes = (
        nb * block_b * H * 2          # h scratch (bf16)
        + 2 * block_b * d_in * 2      # x tile, double-buffered
        + 2 * d_in * H * 2            # W1
        + 2 * H * d_out * 2           # W2
        + 2 * block_b * d_out * 4     # out tile
        + 12 * H * 4 + 4 * d_out * 4  # stats/scale/shift/gamma/beta/b2
    )
    use_fused = (not force_two_phase) and fused_bytes <= int(vmem_limit * 0.85)

    if use_fused:
        return pl.pallas_call(
            functools.partial(_fused_kernel, inv_b),
            grid=(2, nb),
            in_specs=[
                # x is only consumed during pass 0; during pass 1 pin its block
                # index to the last fetched tile so nothing new is DMA'd.
                pl.BlockSpec((block_b, d_in),
                             lambda p, i: (i * (1 - p) + (nb - 1) * p, 0),
                             memory_space=vmem),
                pl.BlockSpec((d_in, H), lambda p, i: (0, 0), memory_space=vmem),
                pl.BlockSpec((1, H), lambda p, i: (0, 0), memory_space=vmem),
                pl.BlockSpec((1, H), lambda p, i: (0, 0), memory_space=vmem),
                pl.BlockSpec((H, d_out), lambda p, i: (0, 0), memory_space=vmem),
                pl.BlockSpec((1, d_out), lambda p, i: (0, 0), memory_space=vmem),
            ],
            # During pass 0 the output block index stays at 0 (never flushed
            # until valid pass-1 data has been written).
            out_specs=pl.BlockSpec((block_b, d_out), lambda p, i: (i * p, 0),
                                   memory_space=vmem),
            out_shape=jax.ShapeDtypeStruct((B, d_out), jnp.float32),
            scratch_shapes=[
                pltpu.VMEM((nb, block_b, H), jnp.bfloat16),   # parked h
                pltpu.VMEM((1, H), jnp.float32),              # sum
                pltpu.VMEM((1, H), jnp.float32),              # sumsq
                pltpu.VMEM((1, H), jnp.float32),              # scale
                pltpu.VMEM((1, H), jnp.float32),              # shift
            ],
            compiler_params=pltpu.CompilerParams(
                dimension_semantics=("arbitrary", "arbitrary"),
                vmem_limit_bytes=vmem_limit,
            ),
        )(x_bf, w1_bf, gamma2, beta2, w2_bf, b22)

    # ------------------- Two-phase fallback (very large B) -------------------
    n_splits = 2 if (nb % 2 == 0 and nb >= 2) else 1
    nps = nb // n_splits

    h, col_sum, col_sumsq = pl.pallas_call(
        _stats_kernel,
        grid=(n_splits, nps),
        in_specs=[
            pl.BlockSpec((block_b, d_in), lambda c, i: (c * nps + i, 0),
                         memory_space=vmem),
            pl.BlockSpec((d_in, H), lambda c, i: (0, 0), memory_space=vmem),
        ],
        out_specs=[
            pl.BlockSpec((block_b, H), lambda c, i: (c * nps + i, 0),
                         memory_space=vmem),
            pl.BlockSpec((1, H), lambda c, i: (c, 0), memory_space=vmem),
            pl.BlockSpec((1, H), lambda c, i: (c, 0), memory_space=vmem),
        ],
        out_shape=(
            jax.ShapeDtypeStruct((B, H), jnp.bfloat16),        # h stored bf16
            jax.ShapeDtypeStruct((n_splits, H), jnp.float32),  # partial sums
            jax.ShapeDtypeStruct((n_splits, H), jnp.float32),  # partial sumsq
        ),
        compiler_params=pltpu.CompilerParams(
            dimension_semantics=("parallel", "arbitrary"),     # megacore split
            vmem_limit_bytes=vmem_limit,
        ),
    )(x_bf, w1_bf)

    return pl.pallas_call(
        functools.partial(_bn_relu_proj_kernel, inv_b),
        grid=(nb,),
        in_specs=[
            pl.BlockSpec((block_b, H), lambda i: (i, 0), memory_space=vmem),
            pl.BlockSpec((n_splits, H), lambda i: (0, 0), memory_space=vmem),
            pl.BlockSpec((n_splits, H), lambda i: (0, 0), memory_space=vmem),
            pl.BlockSpec((1, H), lambda i: (0, 0), memory_space=vmem),
            pl.BlockSpec((1, H), lambda i: (0, 0), memory_space=vmem),
            pl.BlockSpec((H, d_out), lambda i: (0, 0), memory_space=vmem),
            pl.BlockSpec((1, d_out), lambda i: (0, 0), memory_space=vmem),
        ],
        out_specs=pl.BlockSpec((block_b, d_out), lambda i: (i, 0),
                               memory_space=vmem),
        out_shape=jax.ShapeDtypeStruct((B, d_out), jnp.float32),
        compiler_params=pltpu.CompilerParams(
            dimension_semantics=("parallel",),
            vmem_limit_bytes=vmem_limit,
        ),
    )(h, col_sum, col_sumsq, gamma2, beta2, w2_bf, b22)


def _reference(x, w1, gamma, beta, w2, b2):
    # Pure-JAX mirror of the kernels' mixed-precision recipe: bf16 MXU
    # operands with f32 accumulation, batch stats from f32 h, h round-tripped
    # through bf16 (scratch/HBM), BN + normalize in f32.
    xb = x.astype(jnp.bfloat16)
    w1b = w1.astype(jnp.bfloat16)
    w2b = w2.astype(jnp.bfloat16)
    h = jnp.dot(xb, w1b, preferred_element_type=jnp.float32)
    mean = h.mean(axis=0, keepdims=True)
    var = ((h - mean) ** 2).mean(axis=0, keepdims=True)   # biased (training)
    hq = h.astype(jnp.bfloat16).astype(jnp.float32)       # mirrors bf16 h storage
    a = jnp.maximum((hq - mean) / jnp.sqrt(var + BN_EPS) * gamma + beta, 0.0)
    y = jnp.dot(a.astype(jnp.bfloat16), w2b,
                preferred_element_type=jnp.float32) + b2
    n = jnp.maximum(jnp.linalg.norm(y, axis=1, keepdims=True), NORM_EPS)
    return y / n


if __name__ == "__main__":
    # Small shapes consistent with the module (hidden width 512 is hardcoded by
    # the nn.Sequential; batch / in / out dims shrunk for the test).
    B, D_IN, HIDDEN, D_OUT = 32, 256, 512, 128
    BLOCK_B = 8   # several batch tiles -> exercises accumulation + both passes

    key = jax.random.PRNGKey(0)
    kx, kw1, kw2, kb2 = jax.random.split(key, 4)

    x = jax.random.normal(kx, (B, D_IN), dtype=jnp.float32)
    # Deterministic synthetic parameters (shapes from Projection.__init__).
    w1 = jax.random.normal(kw1, (D_IN, HIDDEN), dtype=jnp.float32) * (1.0 / D_IN ** 0.5)
    gamma = jnp.ones((HIDDEN,), dtype=jnp.float32)   # BatchNorm1d weight init
    beta = jnp.zeros((HIDDEN,), dtype=jnp.float32)   # BatchNorm1d bias init
    w2 = jax.random.normal(kw2, (HIDDEN, D_OUT), dtype=jnp.float32) * (1.0 / HIDDEN ** 0.5)
    b2 = jax.random.normal(kb2, (D_OUT,), dtype=jnp.float32) * 0.01

    ref = _reference(x, w1, gamma, beta, w2, b2)

    # Fused single-kernel path (default at this size).
    out_fused = projection_forward(x, w1, gamma, beta, w2, b2, block_b=BLOCK_B)
    out_fused = jax.block_until_ready(out_fused)
    assert out_fused.shape == (B, D_OUT)
    assert jnp.allclose(out_fused, ref, atol=3e-3, rtol=3e-3), \
        "fused path mismatch vs. pure-JAX reference"
    assert jnp.allclose(jnp.linalg.norm(out_fused, axis=1), 1.0, atol=1e-4)

    # Two-phase fallback path (bf16 h in HBM, split partial stats).
    out_2p = projection_forward(x, w1, gamma, beta, w2, b2, block_b=BLOCK_B,
                                force_two_phase=True)
    out_2p = jax.block_until_ready(out_2p)
    assert out_2p.shape == (B, D_OUT)
    assert jnp.allclose(out_2p, ref, atol=3e-3, rtol=3e-3), \
        "two-phase path mismatch vs. pure-JAX reference"
    assert jnp.allclose(jnp.linalg.norm(out_2p, axis=1), 1.0, atol=1e-4)

    print("KERNEL_OK")
</pallas_src>

<mosaic_0001>
module attributes {stable_mosaic.version = 11 : i64} {
  func.func @_fused_kernel(%arg0: i32, %arg1: i32, %arg2: memref<8x256xbf16, #tpu.memory_space<vmem>>, %arg3: memref<256x512xbf16, #tpu.memory_space<vmem>>, %arg4: memref<1x512xf32, #tpu.memory_space<vmem>>, %arg5: memref<1x512xf32, #tpu.memory_space<vmem>>, %arg6: memref<512x128xbf16, #tpu.memory_space<vmem>>, %arg7: memref<1x128xf32, #tpu.memory_space<vmem>>, %arg8: memref<8x128xf32, #tpu.memory_space<vmem>>, %arg9: memref<4x8x512xbf16, #tpu.memory_space<vmem>>, %arg10: memref<1x512xf32, #tpu.memory_space<vmem>>, %arg11: memref<1x512xf32, #tpu.memory_space<vmem>>, %arg12: memref<1x512xf32, #tpu.memory_space<vmem>>, %arg13: memref<1x512xf32, #tpu.memory_space<vmem>>) attributes {dimension_semantics = [#tpu.dimension_semantics<arbitrary>, #tpu.dimension_semantics<arbitrary>], iteration_bounds = array<i64: 2, 4>, scalar_prefetch = 0 : i64, scratch_operands = 5 : i64, tpu.core_type = #tpu.core_type<tc>, window_params = [{transform_indices = @transform_0, window_bounds = array<i64: 8, 256>}, {pipeline_mode = #tpu.pipeline_mode<synchronous>, transform_indices = @transform_1, window_bounds = array<i64: 256, 512>}, {pipeline_mode = #tpu.pipeline_mode<synchronous>, transform_indices = @transform_2, window_bounds = array<i64: 1, 512>}, {pipeline_mode = #tpu.pipeline_mode<synchronous>, transform_indices = @transform_3, window_bounds = array<i64: 1, 512>}, {pipeline_mode = #tpu.pipeline_mode<synchronous>, transform_indices = @transform_4, window_bounds = array<i64: 512, 128>}, {pipeline_mode = #tpu.pipeline_mode<synchronous>, transform_indices = @transform_5, window_bounds = array<i64: 1, 128>}, {transform_indices = @transform_6, window_bounds = array<i64: 8, 128>}]} {
    %c0_i32 = arith.constant 0 : i32
    %0 = arith.cmpi eq, %arg0, %c0_i32 : i32
    %c0_i32_0 = arith.constant 0 : i32
    %1 = arith.cmpi eq, %arg1, %c0_i32_0 : i32
    %2 = arith.andi %0, %1 : i1
    %3 = arith.extui %2 : i1 to i32
    %c0_i32_1 = arith.constant 0 : i32
    %4 = arith.cmpi ne, %3, %c0_i32_1 : i32
    scf.if %4 {
      %cst = arith.constant 0.000000e+00 : f32
      %16 = vector.broadcast %cst : f32 to vector<1x512xf32>
      %c0 = arith.constant 0 : index
      %c0_8 = arith.constant 0 : index
      %17 = vector.load %arg10[%c0, %c0_8] : memref<1x512xf32, #tpu.memory_space<vmem>>, vector<1x512xf32>
      tpu.vector_store %arg10[%c0, %c0_8], %16 {strides = array<i32>} : memref<1x512xf32, #tpu.memory_space<vmem>>, vector<1x512xf32>,
      %cst_9 = arith.constant 0.000000e+00 : f32
      %18 = vector.broadcast %cst_9 : f32 to vector<1x512xf32>
      %c0_10 = arith.constant 0 : index
      %c0_11 = arith.constant 0 : index
      %19 = vector.load %arg11[%c0_10, %c0_11] : memref<1x512xf32, #tpu.memory_space<vmem>>, vector<1x512xf32>
      tpu.vector_store %arg11[%c0_10, %c0_11], %18 {strides = array<i32>} : memref<1x512xf32, #tpu.memory_space<vmem>>, vector<1x512xf32>,
    } else {
    }
    %c0_i32_2 = arith.constant 0 : i32
    %5 = arith.cmpi eq, %arg0, %c0_i32_2 : i32
    %6 = arith.extui %5 : i1 to i32
    %c0_i32_3 = arith.constant 0 : i32
    %7 = arith.cmpi ne, %6, %c0_i32_3 : i32
    scf.if %7 {
      %c0 = arith.constant 0 : index
      %c0_8 = arith.constant 0 : index
      %16 = vector.load %arg2[%c0, %c0_8] : memref<8x256xbf16, #tpu.memory_space<vmem>>, vector<8x256xbf16>
      %c0_9 = arith.constant 0 : index
      %c0_10 = arith.constant 0 : index
      %17 = vector.load %arg3[%c0_9, %c0_10] : memref<256x512xbf16, #tpu.memory_space<vmem>>, vector<256x512xbf16>
      %cst = arith.constant dense<0.000000e+00> : vector<8x512xf32>
      %18 = tpu.matmul %16, %17, %cst {dimension_numbers = #tpu.dot_dimension_numbers<[1], [0], [0], [1], [0, 0, 1, 1], [], []>} : vector<8x256xbf16>, vector<256x512xbf16>, vector<8x512xf32> -> vector<8x512xf32>
      %c0_11 = arith.constant 0 : index
      %c0_12 = arith.constant 0 : index
      %19 = vector.load %arg10[%c0_11, %c0_12] : memref<1x512xf32, #tpu.memory_space<vmem>>, vector<1x512xf32>
      %cst_13 = arith.constant dense<0.000000e+00> : vector<512xf32>
      %20 = vector.multi_reduction <add>, %18, %cst_13 [0] : vector<8x512xf32> to vector<512xf32>
      %21 = vector.shape_cast %20 : vector<512xf32> to vector<1x512xf32>
      %22 = arith.addf %19, %21 : vector<1x512xf32>
      %c0_14 = arith.constant 0 : index
      %c0_15 = arith.constant 0 : index
      %23 = vector.load %arg10[%c0_14, %c0_15] : memref<1x512xf32, #tpu.memory_space<vmem>>, vector<1x512xf32>
      tpu.vector_store %arg10[%c0_14, %c0_15], %22 {strides = array<i32>} : memref<1x512xf32, #tpu.memory_space<vmem>>, vector<1x512xf32>,
      %c0_16 = arith.constant 0 : index
      %c0_17 = arith.constant 0 : index
      %24 = vector.load %arg11[%c0_16, %c0_17] : memref<1x512xf32, #tpu.memory_space<vmem>>, vector<1x512xf32>
      %25 = arith.mulf %18, %18 : vector<8x512xf32>
      %cst_18 = arith.constant dense<0.000000e+00> : vector<512xf32>
      %26 = vector.multi_reduction <add>, %25, %cst_18 [0] : vector<8x512xf32> to vector<512xf32>
      %27 = vector.shape_cast %26 : vector<512xf32> to vector<1x512xf32>
      %28 = arith.addf %24, %27 : vector<1x512xf32>
      %c0_19 = arith.constant 0 : index
      %c0_20 = arith.constant 0 : index
      %29 = vector.load %arg11[%c0_19, %c0_20] : memref<1x512xf32, #tpu.memory_space<vmem>>, vector<1x512xf32>
      tpu.vector_store %arg11[%c0_19, %c0_20], %28 {strides = array<i32>} : memref<1x512xf32, #tpu.memory_space<vmem>>, vector<1x512xf32>,
      %30 = arith.truncf %18 : vector<8x512xf32> to vector<8x512xbf16>
      %31 = arith.index_cast %arg1 : i32 to index
      %c0_21 = arith.constant 0 : index
      %c0_22 = arith.constant 0 : index
      %32 = vector.load %arg9[%31, %c0_21, %c0_22] : memref<4x8x512xbf16, #tpu.memory_space<vmem>>, vector<1x8x512xbf16>
      %33 = vector.shape_cast %32 : vector<1x8x512xbf16> to vector<8x512xbf16>
      %34 = vector.shape_cast %30 : vector<8x512xbf16> to vector<1x8x512xbf16>
      tpu.vector_store %arg9[%31, %c0_21, %c0_22], %34 {strides = array<i32>} : memref<4x8x512xbf16, #tpu.memory_space<vmem>>, vector<1x8x512xbf16>,
    } else {
    }
    %c1_i32 = arith.constant 1 : i32
    %8 = arith.cmpi eq, %arg0, %c1_i32 : i32
    %c0_i32_4 = arith.constant 0 : i32
    %9 = arith.cmpi eq, %arg1, %c0_i32_4 : i32
    %10 = arith.andi %8, %9 : i1
    %11 = arith.extui %10 : i1 to i32
    %c0_i32_5 = arith.constant 0 : i32
    %12 = arith.cmpi ne, %11, %c0_i32_5 : i32
    scf.if %12 {
      %c0 = arith.constant 0 : index
      %c0_8 = arith.constant 0 : index
      %16 = vector.load %arg10[%c0, %c0_8] : memref<1x512xf32, #tpu.memory_space<vmem>>, vector<1x512xf32>
      %cst = arith.constant 3.125000e-02 : f32
      %17 = vector.broadcast %cst : f32 to vector<1x512xf32>
      %18 = arith.mulf %16, %17 : vector<1x512xf32>
      %c0_9 = arith.constant 0 : index
      %c0_10 = arith.constant 0 : index
      %19 = vector.load %arg11[%c0_9, %c0_10] : memref<1x512xf32, #tpu.memory_space<vmem>>, vector<1x512xf32>
      %cst_11 = arith.constant 3.125000e-02 : f32
      %20 = vector.broadcast %cst_11 : f32 to vector<1x512xf32>
      %21 = arith.mulf %19, %20 : vector<1x512xf32>
      %22 = arith.mulf %18, %18 : vector<1x512xf32>
      %23 = arith.subf %21, %22 : vector<1x512xf32>
      %c0_12 = arith.constant 0 : index
      %c0_13 = arith.constant 0 : index
      %24 = vector.load %arg4[%c0_12, %c0_13] : memref<1x512xf32, #tpu.memory_space<vmem>>, vector<1x512xf32>
      %cst_14 = arith.constant 9.99999974E-6 : f32
      %25 = vector.broadcast %cst_14 : f32 to vector<1x512xf32>
      %26 = arith.addf %23, %25 : vector<1x512xf32>
      %27 = math.rsqrt %26 : vector<1x512xf32>
      %28 = arith.mulf %24, %27 : vector<1x512xf32>
      %c0_15 = arith.constant 0 : index
      %c0_16 = arith.constant 0 : index
      %29 = vector.load %arg12[%c0_15, %c0_16] : memref<1x512xf32, #tpu.memory_space<vmem>>, vector<1x512xf32>
      tpu.vector_store %arg12[%c0_15, %c0_16], %28 {strides = array<i32>} : memref<1x512xf32, #tpu.memory_space<vmem>>, vector<1x512xf32>,
      %c0_17 = arith.constant 0 : index
      %c0_18 = arith.constant 0 : index
      %30 = vector.load %arg5[%c0_17, %c0_18] : memref<1x512xf32, #tpu.memory_space<vmem>>, vector<1x512xf32>
      %31 = arith.mulf %18, %28 : vector<1x512xf32>
      %32 = arith.subf %30, %31 : vector<1x512xf32>
      %c0_19 = arith.constant 0 : index
      %c0_20 = arith.constant 0 : index
      %33 = vector.load %arg13[%c0_19, %c0_20] : memref<1x512xf32, #tpu.memory_space<vmem>>, vector<1x512xf32>
      tpu.vector_store %arg13[%c0_19, %c0_20], %32 {strides = array<i32>} : memref<1x512xf32, #tpu.memory_space<vmem>>, vector<1x512xf32>,
    } else {
    }
    %c1_i32_6 = arith.constant 1 : i32
    %13 = arith.cmpi eq, %arg0, %c1_i32_6 : i32
    %14 = arith.extui %13 : i1 to i32
    %c0_i32_7 = arith.constant 0 : i32
    %15 = arith.cmpi ne, %14, %c0_i32_7 : i32
    scf.if %15 {
      %16 = arith.index_cast %arg1 : i32 to index
      %c0 = arith.constant 0 : index
      %c0_8 = arith.constant 0 : index
      %17 = vector.load %arg9[%16, %c0, %c0_8] : memref<4x8x512xbf16, #tpu.memory_space<vmem>>, vector<1x8x512xbf16>
      %18 = vector.shape_cast %17 : vector<1x8x512xbf16> to vector<8x512xbf16>
      %19 = arith.extf %18 : vector<8x512xbf16> to vector<8x512xf32>
      %c0_9 = arith.constant 0 : index
      %c0_10 = arith.constant 0 : index
      %20 = vector.load %arg12[%c0_9, %c0_10] : memref<1x512xf32, #tpu.memory_space<vmem>>, vector<1x512xf32>
      %21 = vector.broadcast %20 : vector<1x512xf32> to vector<8x512xf32>
      %22 = arith.mulf %19, %21 : vector<8x512xf32>
      %c0_11 = arith.constant 0 : index
      %c0_12 = arith.constant 0 : index
      %23 = vector.load %arg13[%c0_11, %c0_12] : memref<1x512xf32, #tpu.memory_space<vmem>>, vector<1x512xf32>
      %24 = vector.broadcast %23 : vector<1x512xf32> to vector<8x512xf32>
      %25 = arith.addf %22, %24 : vector<8x512xf32>
      %cst = arith.constant 0.000000e+00 : f32
      %26 = vector.broadcast %cst : f32 to vector<8x512xf32>
      %27 = arith.maximumf %25, %26 : vector<8x512xf32>
      %28 = arith.truncf %27 : vector<8x512xf32> to vector<8x512xbf16>
      %c0_13 = arith.constant 0 : index
      %c0_14 = arith.constant 0 : index
      %29 = vector.load %arg6[%c0_13, %c0_14] : memref<512x128xbf16, #tpu.memory_space<vmem>>, vector<512x128xbf16>
      %cst_15 = arith.constant dense<0.000000e+00> : vector<8x128xf32>
      %30 = tpu.matmul %28, %29, %cst_15 {dimension_numbers = #tpu.dot_dimension_numbers<[1], [0], [0], [1], [0, 0, 1, 1], [], []>} : vector<8x512xbf16>, vector<512x128xbf16>, vector<8x128xf32> -> vector<8x128xf32>
      %c0_16 = arith.constant 0 : index
      %c0_17 = arith.constant 0 : index
      %31 = vector.load %arg7[%c0_16, %c0_17] : memref<1x128xf32, #tpu.memory_space<vmem>>, vector<1x128xf32>
      %32 = vector.broadcast %31 : vector<1x128xf32> to vector<8x128xf32>
      %33 = arith.addf %30, %32 : vector<8x128xf32>
      %34 = arith.mulf %33, %33 : vector<8x128xf32>
      %cst_18 = arith.constant dense<0.000000e+00> : vector<8xf32>
      %35 = vector.multi_reduction <add>, %34, %cst_18 [1] : vector<8x128xf32> to vector<8xf32>
      %36 = vector.shape_cast %35 : vector<8xf32> to vector<8x1xf32>
      %cst_19 = arith.constant 1.000000e-24 : f32
      %37 = vector.broadcast %cst_19 : f32 to vector<8x1xf32>
      %38 = arith.maximumf %36, %37 : vector<8x1xf32>
      %39 = math.rsqrt %38 : vector<8x1xf32>
      %40 = vector.broadcast %39 : vector<8x1xf32> to vector<8x128xf32>
      %41 = arith.mulf %33, %40 : vector<8x128xf32>
      %c0_20 = arith.constant 0 : index
      %c0_21 = arith.constant 0 : index
      %42 = vector.load %arg8[%c0_20, %c0_21] : memref<8x128xf32, #tpu.memory_space<vmem>>, vector<8x128xf32>
      tpu.vector_store %arg8[%c0_20, %c0_21], %41 {strides = array<i32>} : memref<8x128xf32, #tpu.memory_space<vmem>>, vector<8x128xf32>,
    } else {
    }
    return
  }
  func.func @transform_0(%arg0: i32, %arg1: i32) -> (i32, i32) {
    %c1_i32 = arith.constant 1 : i32
    %0 = arith.subi %c1_i32, %arg0 : i32
    %1 = arith.muli %arg1, %0 : i32
    %c3_i32 = arith.constant 3 : i32
    %2 = arith.muli %c3_i32, %arg0 : i32
    %3 = arith.addi %1, %2 : i32
    %c0_i32 = arith.constant 0 : i32
    %c0_i32_0 = arith.constant 0 : i32
    return %3, %c0_i32 : i32, i32
  }
  func.func @transform_1(%arg0: i32, %arg1: i32) -> (i32, i32) {
    %c0_i32 = arith.constant 0 : i32
    %c0_i32_0 = arith.constant 0 : i32
    %c0_i32_1 = arith.constant 0 : i32
    return %c0_i32, %c0_i32_0 : i32, i32
  }
  func.func @transform_2(%arg0: i32, %arg1: i32) -> (i32, i32) {
    %c0_i32 = arith.constant 0 : i32
    %c0_i32_0 = arith.constant 0 : i32
    %c0_i32_1 = arith.constant 0 : i32
    return %c0_i32, %c0_i32_0 : i32, i32
  }
  func.func @transform_3(%arg0: i32, %arg1: i32) -> (i32, i32) {
    %c0_i32 = arith.constant 0 : i32
    %c0_i32_0 = arith.constant 0 : i32
    %c0_i32_1 = arith.constant 0 : i32
    return %c0_i32, %c0_i32_0 : i32, i32
  }
  func.func @transform_4(%arg0: i32, %arg1: i32) -> (i32, i32) {
    %c0_i32 = arith.constant 0 : i32
    %c0_i32_0 = arith.constant 0 : i32
    %c0_i32_1 = arith.constant 0 : i32
    return %c0_i32, %c0_i32_0 : i32, i32
  }
  func.func @transform_5(%arg0: i32, %arg1: i32) -> (i32, i32) {
    %c0_i32 = arith.constant 0 : i32
    %c0_i32_0 = arith.constant 0 : i32
    %c0_i32_1 = arith.constant 0 : i32
    return %c0_i32, %c0_i32_0 : i32, i32
  }
  func.func @transform_6(%arg0: i32, %arg1: i32) -> (i32, i32) {
    %0 = arith.muli %arg1, %arg0 : i32
    %c0_i32 = arith.constant 0 : i32
    %c0_i32_0 = arith.constant 0 : i32
    return %0, %c0_i32 : i32, i32
  }
}

</mosaic_0001>

<llo_original>
// kernel: projection_forward.1
$region0: #{projection_forward.1}
  #allocation0 [shape = 'u32[]', space=smem, size = 0x4, offset = 0x4, fixed_abs, tag = 'smem constant byte address 0x4 - core index']
  #allocation1 [shape = 'u32[144,128]{1,0:T(1,128)}', space=vmem, size = 0x12000, scoped, tag = 'internal scratch']
  #allocation2 [shape = 'bf16[4,8,512]{2,1,0:T(8,128)(2,1)}', space=vmem, size = 0x8000, scoped, tag = 'scratch operand']
  #allocation3 [shape = 'f32[1,512]{1,0:T(1,128)}', space=vmem, size = 0x800, scoped, tag = 'scratch operand']
  #allocation4 [shape = 'f32[1,512]{1,0:T(1,128)}', space=vmem, size = 0x800, scoped, tag = 'scratch operand']
  #allocation5 [shape = 'f32[1,512]{1,0:T(1,128)}', space=vmem, size = 0x800, scoped, tag = 'scratch operand']
  #allocation6 [shape = 'f32[1,512]{1,0:T(1,128)}', space=vmem, size = 0x800, scoped, tag = 'scratch operand']
  %s0 = inlined_call_operand.vmem [shape: bf16[32,256], index: 0, kind: input, shape index: {}]
  %s1 = inlined_call_operand.vmem [shape: bf16[256,512], index: 1, kind: input, shape index: {}]
  %s2 = inlined_call_operand.vmem [shape: f32[1,512], index: 2, kind: input, shape index: {}]
  %s3 = inlined_call_operand.vmem [shape: f32[1,512], index: 3, kind: input, shape index: {}]
  %s4 = inlined_call_operand.vmem [shape: bf16[512,128], index: 4, kind: input, shape index: {}]
  %s5 = inlined_call_operand.vmem [shape: f32[1,128], index: 5, kind: input, shape index: {}]
  %s6 = inlined_call_operand.hbm [shape: f32[32,128], index: 6, kind: output, shape index: {}]
  %s7 = sld [smem:[#allocation0]]
  $region73: #{projection_forward.1} parent=0
    _
  %s9 = ssub.s32 1, %s7
  %s10 = scalar_select 0, %s9, %s7
  $region1: #{projection_forward.1} parent=0
    #allocation7 [shape = 'u8[8192]{0}', space=vmem, size = 0x2000, scoped, tag = 'output window, operand 0']
    #allocation8 [shape = 's32[2]{0}', space=sflag, size = 0x8, scoped, tag = 'scoped memory for projection_forward.1']
    %11 = vsyncpa [#allocation8], 0
    %s12 = scalar_lea.sflag [#allocation8], 1
    %13 = vsyncpa %s12, 0
    loop: start=0, step=1, limit=10
    $region2: #{projection_forward.1} parent=1 // loop_pre_header
      _
    $region3: #{projection_forward.1} parent=1 // loop_header
      %s15 = sphi 0, %s19
      %p16 = scmp.ge.s32.totalorder %s15, 10
      %s22 = sphi 0, %s34
      %s23 = sphi 0, %s30
      %s24 = sphi 0, %s22
      %s25 = sphi 0, %s23
      %s26 = sphi 0, %s24
      %s27 = sphi 0, %s25
      %s45 = sphi 0, %s47
      %s48 = sphi 0, %s45
      %s49 = sphi 0, %s48
      %s65 = sphi 0, %s49
      %s69 = sphi 0, %s69
      %s71 = sphi 0, %s69
      %s72 = sphi 0, %s71
      %s86 = sphi 0, %s72
      %s90 = sphi 0, %s90
      %s92 = sphi 0, %s90
      %s93 = sphi 0, %s92
      %s107 = sphi 0, %s93
      %s111 = sphi 0, %s111
      %s113 = sphi 0, %s111
      %s114 = sphi 0, %s113
      %s128 = sphi 0, %s114
      %s132 = sphi 0, %s132
      %s134 = sphi 0, %s132
      %s135 = sphi 0, %s134
      %s149 = sphi 0, %s135
      %s153 = sphi 0, %s153
      %s155 = sphi 0, %s153
      %s156 = sphi 0, %s155
      %s170 = sphi 0, %s156
      %s178 = sphi 0, %s180
      %s181 = sphi 0, %s178
      %s182 = sphi 0, %s181
      %s198 = sphi 0, %s182
    $region4: #{projection_forward.1} parent=1 // loop_header_branch
      %18 = sbr.rel (%p16) target = $region8
    $region5: #{projection_forward.1} parent=1 // loop_body
      %s20 = ssub.s32 %s15, 1
      %s21 = ssub.s32 %s15, 2
      %s28 = sadd.s32 1, %s23
      %p29 = scmp.ge.s32.totalorder %s28, 4
      %s30 = scalar_select %p29, 0, %s28
      %s31 = sadd.s32 1, %s22
      %s32 = scalar_select %p29, %s31, %s22
      %p33 = scmp.ge.s32.totalorder %s32, 2
      %s34 = scalar_select %p33, 0, %s32
      %s35 = ssub.s32 1, %s22
      %s36 = smul.u32 %s23, %s35
      %s37 = smul.u32 %s22, 3
      %s38 = sadd.s32 %s36, %s37
      %s39 = ssub.s32 1, %s34
      %s40 = smul.u32 %s30, %s39
      %s41 = smul.u32 %s34, 3
      %s42 = sadd.s32 %s40, %s41
      %s43 = ssub.s32 %s38, %s42
      %p44 = scmp.eq.s32.totalorder %s43, 0
      %s46 = sadd.s32 %s45, 1
      %s47 = scalar_select %p44, %s45, %s46
      %p50 = pneg %p44
      %p51 = scmp.eq.s32.totalorder %s15, 7
      %p52 = por %p50, %p51
      %p53 = scmp.ne.s32.totalorder %s45, %s48
      %p54 = scmp.eq.s32.totalorder %s15, 0
      %p55 = por %p53, %p54
      %p56 = scmp.ne.s32.totalorder %s45, %s48
      %p57 = scmp.eq.s32.totalorder %s20, 7
      %p58 = por %p56, %p57
      %p59 = scmp.ne.s32.totalorder %s48, %s49
      %p60 = scmp.eq.s32.totalorder %s20, 0
      %p61 = por %p59, %p60
      %p62 = scmp.ne.s32.totalorder %s48, %s49
      %p63 = scmp.eq.s32.totalorder %s21, 7
      %p64 = por %p62, %p63
      %p66 = scmp.ne.s32.totalorder %s49, %s65
      %p67 = scmp.eq.s32.totalorder %s21, 0
      %p68 = por %p66, %p67
      %s70 = sadd.s32 %s69, 1
      %p73 = scmp.eq.s32.totalorder %s15, 7
      %p74 = scmp.ne.s32.totalorder %s69, %s71
      %p75 = scmp.eq.s32.totalorder %s15, 0
      %p76 = por %p74, %p75
      %p77 = scmp.ne.s32.totalorder %s69, %s71
      %p78 = scmp.eq.s32.totalorder %s20, 7
      %p79 = por %p77, %p78
      %p80 = scmp.ne.s32.totalorder %s71, %s72
      %p81 = scmp.eq.s32.totalorder %s20, 0
      %p82 = por %p80, %p81
      %p83 = scmp.ne.s32.totalorder %s71, %s72
      %p84 = scmp.eq.s32.totalorder %s21, 7
      %p85 = por %p83, %p84
      %p87 = scmp.ne.s32.totalorder %s72, %s86
      %p88 = scmp.eq.s32.totalorder %s21, 0
      %p89 = por %p87, %p88
      %s91 = sadd.s32 %s90, 1
      %p94 = scmp.eq.s32.totalorder %s15, 7
      %p95 = scmp.ne.s32.totalorder %s90, %s92
      %p96 = scmp.eq.s32.totalorder %s15, 0
      %p97 = por %p95, %p96
      %p98 = scmp.ne.s32.totalorder %s90, %s92
      %p99 = scmp.eq.s32.totalorder %s20, 7
      %p100 = por %p98, %p99
      %p101 = scmp.ne.s32.totalorder %s92, %s93
      %p102 = scmp.eq.s32.totalorder %s20, 0
      %p103 = por %p101, %p102
      %p104 = scmp.ne.s32.totalorder %s92, %s93
      %p105 = scmp.eq.s32.totalorder %s21, 7
      %p106 = por %p104, %p105
      %p108 = scmp.ne.s32.totalorder %s93, %s107
      %p109 = scmp.eq.s32.totalorder %s21, 0
      %p110 = por %p108, %p109
      %s112 = sadd.s32 %s111, 1
      %p115 = scmp.eq.s32.totalorder %s15, 7
      %p116 = scmp.ne.s32.totalorder %s111, %s113
      %p117 = scmp.eq.s32.totalorder %s15, 0
      %p118 = por %p116, %p117
      %p119 = scmp.ne.s32.totalorder %s111, %s113
      %p120 = scmp.eq.s32.totalorder %s20, 7
      %p121 = por %p119, %p120
      %p122 = scmp.ne.s32.totalorder %s113, %s114
      %p123 = scmp.eq.s32.totalorder %s20, 0
      %p124 = por %p122, %p123
      %p125 = scmp.ne.s32.totalorder %s113, %s114
      %p126 = scmp.eq.s32.totalorder %s21, 7
      %p127 = por %p125, %p126
      %p129 = scmp.ne.s32.totalorder %s114, %s128
      %p130 = scmp.eq.s32.totalorder %s21, 0
      %p131 = por %p129, %p130
      %s133 = sadd.s32 %s132, 1
      %p136 = scmp.eq.s32.totalorder %s15, 7
      %p137 = scmp.ne.s32.totalorder %s132, %s134
      %p138 = scmp.eq.s32.totalorder %s15, 0
      %p139 = por %p137, %p138
      %p140 = scmp.ne.s32.totalorder %s132, %s134
      %p141 = scmp.eq.s32.totalorder %s20, 7
      %p142 = por %p140, %p141
      %p143 = scmp.ne.s32.totalorder %s134, %s135
      %p144 = scmp.eq.s32.totalorder %s20, 0
      %p145 = por %p143, %p144
      %p146 = scmp.ne.s32.totalorder %s134, %s135
      %p147 = scmp.eq.s32.totalorder %s21, 7
      %p148 = por %p146, %p147
      %p150 = scmp.ne.s32.totalorder %s135, %s149
      %p151 = scmp.eq.s32.totalorder %s21, 0
      %p152 = por %p150, %p151
      %s154 = sadd.s32 %s153, 1
      %p157 = scmp.eq.s32.totalorder %s15, 7
      %p158 = scmp.ne.s32.totalorder %s153, %s155
      %p159 = scmp.eq.s32.totalorder %s15, 0
      %p160 = por %p158, %p159
      %p161 = scmp.ne.s32.totalorder %s153, %s155
      %p162 = scmp.eq.s32.totalorder %s20, 7
      %p163 = por %p161, %p162
      %p164 = scmp.ne.s32.totalorder %s155, %s156
      %p165 = scmp.eq.s32.totalorder %s20, 0
      %p166 = por %p164, %p165
      %p167 = scmp.ne.s32.totalorder %s155, %s156
      %p168 = scmp.eq.s32.totalorder %s21, 7
      %p169 = por %p167, %p168
      %p171 = scmp.ne.s32.totalorder %s156, %s170
      %p172 = scmp.eq.s32.totalorder %s21, 0
      %p173 = por %p171, %p172
      %s174 = smul.u32 %s23, %s22
      %s175 = smul.u32 %s30, %s34
      %s176 = ssub.s32 %s174, %s175
      %p177 = scmp.eq.s32.totalorder %s176, 0
      %s179 = sadd.s32 %s178, 1
      %s180 = scalar_select %p177, %s178, %s179
      %p183 = pneg %p177
      %p184 = scmp.eq.s32.totalorder %s15, 7
      %p185 = por %p183, %p184
      %p186 = scmp.ne.s32.totalorder %s178, %s181
      %p187 = scmp.eq.s32.totalorder %s15, 0
      %p188 = por %p186, %p187
      %p189 = scmp.ne.s32.totalorder %s178, %s181
      %p190 = scmp.eq.s32.totalorder %s20, 7
      %p191 = por %p189, %p190
      %p192 = scmp.ne.s32.totalorder %s181, %s182
      %p193 = scmp.eq.s32.totalorder %s20, 0
      %p194 = por %p192, %p193
      %p195 = scmp.ne.s32.totalorder %s181, %s182
      %p196 = scmp.eq.s32.totalorder %s21, 7
      %p197 = por %p195, %p196
      %p199 = scmp.ne.s32.totalorder %s182, %s198
      %p200 = scmp.eq.s32.totalorder %s21, 0
      %p201 = por %p199, %p200
      %p202 = scmp.le.s32.totalorder 1, %s15
      %p203 = scmp.lt.s32.totalorder %s15, 9
      %p204 = pnand %p202, %p203
      %p205 = pneg %p204
      // Predicated region
      $region9: #{projection_forward.1} parent=5 // pred_check
        _
      $region10: #{projection_forward.1} parent=5 // pred_check_branch
        %207 = sbr.rel (%p204) target = $region12
      $region11: #{projection_forward.1} parent=5 // pred_region
        %s208 = ssub.s32 %s15, 1
        // Predicated region
        $region13: #{projection_forward.1} parent=11 // pred_check
          %p209 = pneg %p82
        $region14: #{projection_forward.1} parent=11 // pred_check_branch
          %211 = sbr.rel (%p209) target = $region16
        $region15: #{projection_forward.1} parent=11 // pred_region
          _
        $region16: #{projection_forward.1} parent=11 // pred_fallthru
          _
        // Predicated region
        $region17: #{projection_forward.1} parent=11 // pred_check
          %p212 = pneg %p103
        $region18: #{projection_forward.1} parent=11 // pred_check_branch
          %214 = sbr.rel (%p212) target = $region20
        $region19: #{projection_forward.1} parent=11 // pred_region
          _
        $region20: #{projection_forward.1} parent=11 // pred_fallthru
          _
        // Predicated region
        $region21: #{projection_forward.1} parent=11 // pred_check
          %p215 = pneg %p124
        $region22: #{projection_forward.1} parent=11 // pred_check_branch
          %217 = sbr.rel (%p215) target = $region24
        $region23: #{projection_forward.1} parent=11 // pred_region
          _
        $region24: #{projection_forward.1} parent=11 // pred_fallthru
          _
        // Predicated region
        $region25: #{projection_forward.1} parent=11 // pred_check
          %p218 = pneg %p145
        $region26: #{projection_forward.1} parent=11 // pred_check_branch
          %220 = sbr.rel (%p218) target = $region28
        $region27: #{projection_forward.1} parent=11 // pred_region
          _
        $region28: #{projection_forward.1} parent=11 // pred_fallthru
          _
        // Predicated region
        $region29: #{projection_forward.1} parent=11 // pred_check
          %p221 = pneg %p166
        $region30: #{projection_forward.1} parent=11 // pred_check_branch
          %223 = sbr.rel (%p221) target = $region32
        $region31: #{projection_forward.1} parent=11 // pred_region
          _
        $region32: #{projection_forward.1} parent=11 // pred_fallthru
          _
      $region12: #{projection_forward.1} parent=5 // pred_fallthru
        _
      %p224 = scmp.lt.s32.totalorder %s15, 8
      // Predicated region
      $region33: #{projection_forward.1} parent=5 // pred_check
        %p225 = pneg %p224
      $region34: #{projection_forward.1} parent=5 // pred_check_branch
        %227 = sbr.rel (%p225) target = $region36
      $region35: #{projection_forward.1} parent=5 // pred_region
        // Predicated region
        $region37: #{projection_forward.1} parent=35 // pred_check
          %p228 = pneg %p55
        $region38: #{projection_forward.1} parent=35 // pred_check_branch
          %230 = sbr.rel (%p228) target = $region40
        $region39: #{projection_forward.1} parent=35 // pred_region
          %s231 = ssub.s32 1, %s22
          %s232 = smul.u32 %s23, %s231
          %s233 = smul.u32 %s22, 3
          %s234 = sadd.s32 %s232, %s233
          %p235 = scmp.lt.s32.totalorder %s234, 3
          %s236 = scalar_select %p235, %s234, 3
          %s237 = smul.addr %s236, 2
          %s238 = smul.addr %s237, 4
          %s239 = scalar_lea.vmem %s0, %s238
          %s240 = ssub.s32 1, %s22
          %s241 = smul.u32 %s23, %s240
          %s242 = smul.u32 %s22, 3
          %s243 = sadd.s32 %s241, %s242
        $region40: #{projection_forward.1} parent=35 // pred_fallthru
          _
      $region36: #{projection_forward.1} parent=5 // pred_fallthru
        _
      %p244 = scmp.le.s32.totalorder 1, %s15
      %p245 = scmp.lt.s32.totalorder %s15, 9
      %p246 = pnand %p244, %p245
      %p247 = pneg %p246
      // Predicated region
      $region41: #{projection_forward.1} parent=5 // pred_check
        _
      $region42: #{projection_forward.1} parent=5 // pred_check_branch
        %249 = sbr.rel (%p246) target = $region44
      $region43: #{projection_forward.1} parent=5 // pred_region
        %s250 = ssub.s32 %s15, 1
        %s251 = ssub.s32 1, %s24
        %s252 = smul.u32 %s25, %s251
        %s253 = smul.u32 %s24, 3
        %s254 = sadd.s32 %s252, %s253
        %p255 = scmp.lt.s32.totalorder %s254, 3
        %s256 = scalar_select %p255, %s254, 3
        %s257 = smul.addr %s256, 2
        %s258 = smul.addr %s257, 4
        %s259 = scalar_lea.vmem %s0, %s258
        %p260 = pneg %p61
        %p261 = pneg %p58
        %p262 = pneg %p82
        %p263 = pneg %p79
        %p264 = pneg %p103
        %p265 = pneg %p100
        %p266 = pneg %p124
        %p267 = pneg %p121
        %p268 = pneg %p145
        %p269 = pneg %p142
        %p270 = pneg %p166
        %p271 = pneg %p163
        %p272 = pneg %p194
        %p273 = pneg %p191
        %s274 = sand.u32 %s181, 1
        %s275 = scalar_lea.sflag [#allocation8], %s274
        %s276 = sand.u32 %s181, 1
        %s277 = smul.addr %s276, 8
        %s278 = scalar_lea.vmem [#allocation7], %s277
        %s279 = ssub.s32 1, %s24
        %s280 = smul.u32 %s25, %s279
        %s281 = smul.u32 %s24, 3
        %s282 = sadd.s32 %s280, %s281
        %p283 = scmp.lt.s32.totalorder %s282, 3
        %s284 = scalar_select %p283, %s282, 3
        %s285 = smul.addr %s284, 2
        %s286 = smul.addr %s285, 4
        %s287 = scalar_lea.vmem %s0, %s286
        %s288 = ssub.s32 1, %s24
        %s289 = smul.u32 %s25, %s288
        %s290 = smul.u32 %s24, 3
        %s291 = sadd.s32 %s289, %s290
        %s292 = smul.u32 %s25, %s24
        %p294 = scmp.eq.s32.totalorder %s24, 0
        %p295 = scmp.eq.s32.totalorder %s25, 0
        %p296 = pnand %p294, %p295
        %p297 = pneg %p296
        // Predicated region
        $region45: #{projection_forward.1} parent=43 // pred_check
          _
        $region46: #{projection_forward.1} parent=43 // pred_check_branch
          %299 = sbr.rel (%p296) target = $region48
        $region47: #{projection_forward.1} parent=43 // pred_region
          %v300 = vlaneseq
          %vm301 = vcmp.ge.s32.totalorder %v300, 0
          %vm302 = vcmp.lt.s32.totalorder %v300, 512
          %vm303 = vmand %vm301, %vm302
          %304 = vst.msk [vmem:[#allocation3] sm:$0xf] %vm303, 0.0
          %305 = vst.msk [vmem:[#allocation4] sm:$0xf] %vm303, 0.0
        $region48: #{projection_forward.1} parent=43 // pred_fallthru
          _
        // Predicated region
        $region49: #{projection_forward.1} parent=43 // pred_check
          %p306 = pneg %p294
        $region50: #{projection_forward.1} parent=43 // pred_check_branch
          %308 = sbr.rel (%p306) target = $region52
        $region51: #{projection_forward.1} parent=43 // pred_region
          %v309 = vld [vmem:[%s287] sm:$0xff]
          %v310 = vld [vmem:[%s1] sm:$0xff]
          %v311 = vld [vmem:[%s1 + $0x8] sm:$0xff]
          %v312 = vld [vmem:[%s1 + $0x10] sm:$0xff]
          %v313 = vld [vmem:[%s1 + $0x18] sm:$0xff]
          %v314 = vld [vmem:[%s1 + $0x20] sm:$0xff]
          %v315 = vld [vmem:[%s1 + $0x28] sm:$0xff]
          %v316 = vld [vmem:[%s1 + $0x30] sm:$0xff]
          %v317 = vld [vmem:[%s1 + $0x38] sm:$0xff]
          %v318 = vld [vmem:[%s1 + $0x40] sm:$0xff]
          %v319 = vld [vmem:[%s1 + $0x48] sm:$0xff]
          %v320 = vld [vmem:[%s1 + $0x50] sm:$0xff]
          %v321 = vld [vmem:[%s1 + $0x58] sm:$0xff]
          %v322 = vld [vmem:[%s1 + $0x60] sm:$0xff]
          %v323 = vld [vmem:[%s1 + $0x68] sm:$0xff]
          %v324 = vld [vmem:[%s1 + $0x70] sm:$0xff]
          %v325 = vld [vmem:[%s1 + $0x78] sm:$0xff]
          %v326 = vld [vmem:[%s1 + $0x80] sm:$0xff]
          %v327 = vld [vmem:[%s1 + $0x88] sm:$0xff]
          %v328 = vld [vmem:[%s1 + $0x90] sm:$0xff]
          %v329 = vld [vmem:[%s1 + $0x98] sm:$0xff]
          %v330 = vld [vmem:[%s1 + $0xa0] sm:$0xff]
          %v331 = vld [vmem:[%s1 + $0xa8] sm:$0xff]
          %v332 = vld [vmem:[%s1 + $0xb0] sm:$0xff]
          %v333 = vld [vmem:[%s1 + $0xb8] sm:$0xff]
          %v334 = vld [vmem:[%s1 + $0xc0] sm:$0xff]
          %v335 = vld [vmem:[%s1 + $0xc8] sm:$0xff]
          %v336 = vld [vmem:[%s1 + $0xd0] sm:$0xff]
          %v337 = vld [vmem:[%s1 + $0xd8] sm:$0xff]
          %v338 = vld [vmem:[%s1 + $0xe0] sm:$0xff]
          %v339 = vld [vmem:[%s1 + $0xe8] sm:$0xff]
          %v340 = vld [vmem:[%s1 + $0xf0] sm:$0xff]
          %v341 = vld [vmem:[%s1 + $0xf8] sm:$0xff]
          %v342 = vld [vmem:[%s1 + $0x100] sm:$0xff]
          %v343 = vld [vmem:[%s1 + $0x108] sm:$0xff]
          %v344 = vld [vmem:[%s1 + $0x110] sm:$0xff]
          %v345 = vld [vmem:[%s1 + $0x118] sm:$0xff]
          %v346 = vld [vmem:[%s1 + $0x120] sm:$0xff]
          %v347 = vld [vmem:[%s1 + $0x128] sm:$0xff]
          %v348 = vld [vmem:[%s1 + $0x130] sm:$0xff]
          %v349 = vld [vmem:[%s1 + $0x138] sm:$0xff]
          %v350 = vld [vmem:[%s1 + $0x140] sm:$0xff]
          %v351 = vld [vmem:[%s1 + $0x148] sm:$0xff]
          %v352 = vld [vmem:[%s1 + $0x150] sm:$0xff]
          %v353 = vld [vmem:[%s1 + $0x158] sm:$0xff]
          %v354 = vld [vmem:[%s1 + $0x160] sm:$0xff]
          %v355 = vld [vmem:[%s1 + $0x168] sm:$0xff]
          %v356 = vld [vmem:[%s1 + $0x170] sm:$0xff]
          %v357 = vld [vmem:[%s1 + $0x178] sm:$0xff]
          %v358 = vld [vmem:[%s1 + $0x180] sm:$0xff]
          %v359 = vld [vmem:[%s1 + $0x188] sm:$0xff]
          %v360 = vld [vmem:[%s1 + $0x190] sm:$0xff]
          %v361 = vld [vmem:[%s1 + $0x198] sm:$0xff]
          %v362 = vld [vmem:[%s1 + $0x1a0] sm:$0xff]
          %v363 = vld [vmem:[%s1 + $0x1a8] sm:$0xff]
          %v364 = vld [vmem:[%s1 + $0x1b0] sm:$0xff]
          %v365 = vld [vmem:[%s1 + $0x1b8] sm:$0xff]
          %v366 = vld [vmem:[%s1 + $0x1c0] sm:$0xff]
          %v367 = vld [vmem:[%s1 + $0x1c8] sm:$0xff]
          %v368 = vld [vmem:[%s1 + $0x1d0] sm:$0xff]
          %v369 = vld [vmem:[%s1 + $0x1d8] sm:$0xff]
          %v370 = vld [vmem:[%s1 + $0x1e0] sm:$0xff]
          %v371 = vld [vmem:[%s1 + $0x1e8] sm:$0xff]
          %v372 = vld [vmem:[%s1 + $0x1f0] sm:$0xff]
          %v373 = vld [vmem:[%s1 + $0x1f8] sm:$0xff]
          %v375 = vunpack.c.l.b16 %v309
          %v376 = vunpack.c.h.b16 %v309
          %v377 = vpack.c.b16 %v375, %v375
          %v378 = vpack.c.b16 %v376, %v376
          %v445 = vunpack.c.l.b16 %v310
          %v446 = vunpack.c.h.b16 %v310
          %v447 = vunpack.c.l.b16 %v311
          %v448 = vunpack.c.h.b16 %v311
          %v449 = vunpack.c.l.b16 %v312
          %v450 = vunpack.c.h.b16 %v312
          %v451 = vunpack.c.l.b16 %v313
          %v452 = vunpack.c.h.b16 %v313
          %v453 = vunpack.c.l.b16 %v314
          %v454 = vunpack.c.h.b16 %v314
          %v455 = vunpack.c.l.b16 %v315
          %v456 = vunpack.c.h.b16 %v315
          %v457 = vunpack.c.l.b16 %v316
          %v458 = vunpack.c.h.b16 %v316
          %v459 = vunpack.c.l.b16 %v317
          %v460 = vunpack.c.h.b16 %v317
          %v461 = vunpack.c.l.b16 %v318
          %v462 = vunpack.c.h.b16 %v318
          %v463 = vunpack.c.l.b16 %v319
          %v464 = vunpack.c.h.b16 %v319
          %v465 = vunpack.c.l.b16 %v320
          %v466 = vunpack.c.h.b16 %v320
          %v467 = vunpack.c.l.b16 %v321
          %v468 = vunpack.c.h.b16 %v321
          %v469 = vunpack.c.l.b16 %v322
          %v470 = vunpack.c.h.b16 %v322
          %v471 = vunpack.c.l.b16 %v323
          %v472 = vunpack.c.h.b16 %v323
          %v473 = vunpack.c.l.b16 %v324
          %v474 = vunpack.c.h.b16 %v324
          %v475 = vunpack.c.l.b16 %v325
          %v476 = vunpack.c.h.b16 %v325
          %v477 = vunpack.c.l.b16 %v326
          %v478 = vunpack.c.h.b16 %v326
          %v479 = vunpack.c.l.b16 %v327
          %v480 = vunpack.c.h.b16 %v327
          %v481 = vunpack.c.l.b16 %v328
          %v482 = vunpack.c.h.b16 %v328
          %v483 = vunpack.c.l.b16 %v329
          %v484 = vunpack.c.h.b16 %v329
          %v485 = vunpack.c.l.b16 %v330
          %v486 = vunpack.c.h.b16 %v330
          %v487 = vunpack.c.l.b16 %v331
          %v488 = vunpack.c.h.b16 %v331
          %v489 = vunpack.c.l.b16 %v332
          %v490 = vunpack.c.h.b16 %v332
          %v491 = vunpack.c.l.b16 %v333
          %v492 = vunpack.c.h.b16 %v333
          %v493 = vunpack.c.l.b16 %v334
          %v494 = vunpack.c.h.b16 %v334
          %v495 = vunpack.c.l.b16 %v335
          %v496 = vunpack.c.h.b16 %v335
          %v497 = vunpack.c.l.b16 %v336
          %v498 = vunpack.c.h.b16 %v336
          %v499 = vunpack.c.l.b16 %v337
          %v500 = vunpack.c.h.b16 %v337
          %v501 = vunpack.c.l.b16 %v338
          %v502 = vunpack.c.h.b16 %v338
          %v503 = vunpack.c.l.b16 %v339
          %v504 = vunpack.c.h.b16 %v339
          %v505 = vunpack.c.l.b16 %v340
          %v506 = vunpack.c.h.b16 %v340
          %v507 = vunpack.c.l.b16 %v341
          %v508 = vunpack.c.h.b16 %v341
          %v509 = vunpack.c.l.b16 %v342
          %v510 = vunpack.c.h.b16 %v342
          %v511 = vunpack.c.l.b16 %v343
          %v512 = vunpack.c.h.b16 %v343
          %v513 = vunpack.c.l.b16 %v344
          %v514 = vunpack.c.h.b16 %v344
          %v515 = vunpack.c.l.b16 %v345
          %v516 = vunpack.c.h.b16 %v345
          %v517 = vunpack.c.l.b16 %v346
          %v518 = vunpack.c.h.b16 %v346
          %v519 = vunpack.c.l.b16 %v347
          %v520 = vunpack.c.h.b16 %v347
          %v521 = vunpack.c.l.b16 %v348
          %v522 = vunpack.c.h.b16 %v348
          %v523 = vunpack.c.l.b16 %v349
          %v524 = vunpack.c.h.b16 %v349
          %v525 = vunpack.c.l.b16 %v350
          %v526 = vunpack.c.h.b16 %v350
          %v527 = vunpack.c.l.b16 %v351
          %v528 = vunpack.c.h.b16 %v351
          %v529 = vunpack.c.l.b16 %v352
          %v530 = vunpack.c.h.b16 %v352
          %v531 = vunpack.c.l.b16 %v353
          %v532 = vunpack.c.h.b16 %v353
          %v533 = vunpack.c.l.b16 %v354
          %v534 = vunpack.c.h.b16 %v354
          %v535 = vunpack.c.l.b16 %v355
          %v536 = vunpack.c.h.b16 %v355
          %v537 = vunpack.c.l.b16 %v356
          %v538 = vunpack.c.h.b16 %v356
          %v539 = vunpack.c.l.b16 %v357
          %v540 = vunpack.c.h.b16 %v357
          %v541 = vunpack.c.l.b16 %v358
          %v542 = vunpack.c.h.b16 %v358
          %v543 = vunpack.c.l.b16 %v359
          %v544 = vunpack.c.h.b16 %v359
          %v545 = vunpack.c.l.b16 %v360
          %v546 = vunpack.c.h.b16 %v360
          %v547 = vunpack.c.l.b16 %v361
          %v548 = vunpack.c.h.b16 %v361
          %v549 = vunpack.c.l.b16 %v362
          %v550 = vunpack.c.h.b16 %v362
          %v551 = vunpack.c.l.b16 %v363
          %v552 = vunpack.c.h.b16 %v363
          %v553 = vunpack.c.l.b16 %v364
          %v554 = vunpack.c.h.b16 %v364
          %v555 = vunpack.c.l.b16 %v365
          %v556 = vunpack.c.h.b16 %v365
          %v557 = vunpack.c.l.b16 %v366
          %v558 = vunpack.c.h.b16 %v366
          %v559 = vunpack.c.l.b16 %v367
          %v560 = vunpack.c.h.b16 %v367
          %v561 = vunpack.c.l.b16 %v368
          %v562 = vunpack.c.h.b16 %v368
          %v563 = vunpack.c.l.b16 %v369
          %v564 = vunpack.c.h.b16 %v369
          %v565 = vunpack.c.l.b16 %v370
          %v566 = vunpack.c.h.b16 %v370
          %v567 = vunpack.c.l.b16 %v371
          %v568 = vunpack.c.h.b16 %v371
          %v569 = vunpack.c.l.b16 %v372
          %v570 = vunpack.c.h.b16 %v372
          %v571 = vunpack.c.l.b16 %v373
          %v572 = vunpack.c.h.b16 %v373
          %v573 = vpack.c.b16 %v449, %v445
          %v574 = vpack.c.b16 %v450, %v446
          %v575 = vpack.c.b16 %v451, %v447
          %v576 = vpack.c.b16 %v452, %v448
          %v577 = vpack.c.b16 %v457, %v453
          %v578 = vpack.c.b16 %v458, %v454
          %v579 = vpack.c.b16 %v459, %v455
          %v580 = vpack.c.b16 %v460, %v456
          %v581 = vpack.c.b16 %v465, %v461
          %v582 = vpack.c.b16 %v466, %v462
          %v583 = vpack.c.b16 %v467, %v463
          %v584 = vpack.c.b16 %v468, %v464
          %v585 = vpack.c.b16 %v473, %v469
          %v586 = vpack.c.b16 %v474, %v470
          %v587 = vpack.c.b16 %v475, %v471
          %v588 = vpack.c.b16 %v476, %v472
          %v589 = vpack.c.b16 %v481, %v477
          %v590 = vpack.c.b16 %v482, %v478
          %v591 = vpack.c.b16 %v483, %v479
          %v592 = vpack.c.b16 %v484, %v480
          %v593 = vpack.c.b16 %v489, %v485
          %v594 = vpack.c.b16 %v490, %v486
          %v595 = vpack.c.b16 %v491, %v487
          %v596 = vpack.c.b16 %v492, %v488
          %v597 = vpack.c.b16 %v497, %v493
          %v598 = vpack.c.b16 %v498, %v494
          %v599 = vpack.c.b16 %v499, %v495
          %v600 = vpack.c.b16 %v500, %v496
          %v601 = vpack.c.b16 %v505, %v501
          %v602 = vpack.c.b16 %v506, %v502
          %v603 = vpack.c.b16 %v507, %v503
          %v604 = vpack.c.b16 %v508, %v504
          %v605 = vpack.c.b16 %v513, %v509
          %v606 = vpack.c.b16 %v514, %v510
          %v607 = vpack.c.b16 %v515, %v511
          %v608 = vpack.c.b16 %v516, %v512
          %v609 = vpack.c.b16 %v521, %v517
          %v610 = vpack.c.b16 %v522, %v518
          %v611 = vpack.c.b16 %v523, %v519
          %v612 = vpack.c.b16 %v524, %v520
          %v613 = vpack.c.b16 %v529, %v525
          %v614 = vpack.c.b16 %v530, %v526
          %v615 = vpack.c.b16 %v531, %v527
          %v616 = vpack.c.b16 %v532, %v528
          %v617 = vpack.c.b16 %v537, %v533
          %v618 = vpack.c.b16 %v538, %v534
          %v619 = vpack.c.b16 %v539, %v535
          %v620 = vpack.c.b16 %v540, %v536
          %v621 = vpack.c.b16 %v545, %v541
          %v622 = vpack.c.b16 %v546, %v542
          %v623 = vpack.c.b16 %v547, %v543
          %v624 = vpack.c.b16 %v548, %v544
          %v625 = vpack.c.b16 %v553, %v549
          %v626 = vpack.c.b16 %v554, %v550
          %v627 = vpack.c.b16 %v555, %v551
          %v628 = vpack.c.b16 %v556, %v552
          %v629 = vpack.c.b16 %v561, %v557
          %v630 = vpack.c.b16 %v562, %v558
          %v631 = vpack.c.b16 %v563, %v559
          %v632 = vpack.c.b16 %v564, %v560
          %v633 = vpack.c.b16 %v569, %v565
          %v634 = vpack.c.b16 %v570, %v566
          %v635 = vpack.c.b16 %v571, %v567
          %v636 = vpack.c.b16 %v572, %v568
          %701 = vmatprep.subr.bf16.mxu0 %v574
          %702 = vmatpush1.bf16.msra.mxu0 %v573
          %703 = vmatprep.subr.bf16.mxu0 %v578
          %704 = vmatpush1.bf16.msra.mxu0 %v577
          %705 = vmatprep.subr.bf16.mxu0 %v582
          %706 = vmatpush1.bf16.msra.mxu0 %v581
          %707 = vmatprep.subr.bf16.mxu0 %v586
          %708 = vmatpush1.bf16.msra.mxu0 %v585
          %709 = vmatprep.subr.bf16.mxu0 %v590
          %710 = vmatpush1.bf16.msra.mxu0 %v589
          %711 = vmatprep.subr.bf16.mxu0 %v594
          %712 = vmatpush1.bf16.msra.mxu0 %v593
          %713 = vmatprep.subr.bf16.mxu0 %v598
          %714 = vmatpush1.bf16.msra.mxu0 %v597
          %715 = vmatprep.subr.bf16.mxu0 %v602
          %716 = vmatpush1.bf16.msra.mxu0 %v601
          %717 = vmatprep.subr.bf16.mxu0 %v606
          %718 = vmatpush1.bf16.msra.mxu0 %v605
          %719 = vmatprep.subr.bf16.mxu0 %v610
          %720 = vmatpush1.bf16.msra.mxu0 %v609
          %721 = vmatprep.subr.bf16.mxu0 %v614
          %722 = vmatpush1.bf16.msra.mxu0 %v613
          %723 = vmatprep.subr.bf16.mxu0 %v618
          %724 = vmatpush1.bf16.msra.mxu0 %v617
          %725 = vmatprep.subr.bf16.mxu0 %v622
          %726 = vmatpush1.bf16.msra.mxu0 %v621
          %727 = vmatprep.subr.bf16.mxu0 %v626
          %728 = vmatpush1.bf16.msra.mxu0 %v625
          %729 = vmatprep.subr.bf16.mxu0 %v630
          %730 = vmatpush1.bf16.msra.mxu0 %v629
          %731 = vmatprep.subr.bf16.mxu0 %v634
          %732 = vmatpush1.bf16.msra.mxu0 %v633
          %733 = vmatprep.mubr.bf16.mxu0 %v378
          %734 = vmatmul.mubr.bf16.gmra.mrb[0].mxu0 %v377
          %v735 = vpop.f32.mrb[0].mxu0
          %v736 = vadd.f32 0.0, %v735
          %v737 = vpop.f32.mrb[0].mxu0
          %v738 = vadd.f32 0.0, %v737
          %v739 = vpop.f32.mrb[0].mxu0
          %v740 = vpop.f32.mrb[0].mxu0
          %741 = vdwg.mxu0
          %742 = vmatprep.subr.bf16.mxu0 %v576
          %743 = vmatpush1.bf16.msra.mxu0 %v575
          %744 = vmatprep.subr.bf16.mxu0 %v580
          %745 = vmatpush1.bf16.msra.mxu0 %v579
          %746 = vmatprep.subr.bf16.mxu0 %v584
          %747 = vmatpush1.bf16.msra.mxu0 %v583
          %748 = vmatprep.subr.bf16.mxu0 %v588
          %749 = vmatpush1.bf16.msra.mxu0 %v587
          %750 = vmatprep.subr.bf16.mxu0 %v592
          %751 = vmatpush1.bf16.msra.mxu0 %v591
          %752 = vmatprep.subr.bf16.mxu0 %v596
          %753 = vmatpush1.bf16.msra.mxu0 %v595
          %754 = vmatprep.subr.bf16.mxu0 %v600
          %755 = vmatpush1.bf16.msra.mxu0 %v599
          %756 = vmatprep.subr.bf16.mxu0 %v604
          %757 = vmatpush1.bf16.msra.mxu0 %v603
          %758 = vmatprep.subr.bf16.mxu0 %v608
          %759 = vmatpush1.bf16.msra.mxu0 %v607
          %760 = vmatprep.subr.bf16.mxu0 %v612
          %761 = vmatpush1.bf16.msra.mxu0 %v611
          %762 = vmatprep.subr.bf16.mxu0 %v616
          %763 = vmatpush1.bf16.msra.mxu0 %v615
          %764 = vmatprep.subr.bf16.mxu0 %v620
          %765 = vmatpush1.bf16.msra.mxu0 %v619
          %766 = vmatprep.subr.bf16.mxu0 %v624
          %767 = vmatpush1.bf16.msra.mxu0 %v623
          %768 = vmatprep.subr.bf16.mxu0 %v628
          %769 = vmatpush1.bf16.msra.mxu0 %v627
          %770 = vmatprep.subr.bf16.mxu0 %v632
          %771 = vmatpush1.bf16.msra.mxu0 %v631
          %772 = vmatprep.subr.bf16.mxu0 %v636
          %773 = vmatpush1.bf16.msra.mxu0 %v635
          %774 = vmatprep.mubr.bf16.mxu0 %v378
          %775 = vmatmul.mubr.bf16.gmra.mrb[0].mxu0 %v377
          %v776 = vpop.f32.mrb[0].mxu0
          %v777 = vadd.f32 0.0, %v776
          %v778 = vpop.f32.mrb[0].mxu0
          %v779 = vadd.f32 0.0, %v778
          %v780 = vpop.f32.mrb[0].mxu0
          %v781 = vpop.f32.mrb[0].mxu0
          %782 = vdwg.mxu0
          %v783 = vld [vmem:[#allocation3] sm:$0xf]
          %v784 = vrot.slane %v736, 4
          %v785 = vadd.f32 %v736, %v784
          %v786 = vrot.slane %v785, 2
          %v787 = vadd.f32 %v785, %v786
          %v788 = vrot.slane %v787, 1
          %v789 = vadd.f32 %v787, %v788
          %v790 = vrot.slane %v738, 4
          %v791 = vadd.f32 %v738, %v790
          %v792 = vrot.slane %v791, 2
          %v793 = vadd.f32 %v791, %v792
          %v794 = vrot.slane %v793, 1
          %v795 = vadd.f32 %v793, %v794
          %v796 = vrot.slane %v777, 4
          %v797 = vadd.f32 %v777, %v796
          %v798 = vrot.slane %v797, 2
          %v799 = vadd.f32 %v797, %v798
          %v800 = vrot.slane %v799, 1
          %v801 = vadd.f32 %v799, %v800
          %v802 = vrot.slane %v779, 4
          %v803 = vadd.f32 %v779, %v802
          %v804 = vrot.slane %v803, 2
          %v805 = vadd.f32 %v803, %v804
          %v806 = vrot.slane %v805, 1
          %v807 = vadd.f32 %v805, %v806
          %v812 = vcombine.low %v789, %v795
          %v813 = vcombine.low %v801, %v807
          %v815 = vunpack.c.l.s4 1966171168
          %v816 = vunpack.c.0.s8 %v815
          %v817 = vlaneseq
          %v818 = vshrl.u32 %v817, 7
          %v819 = vsub.s32 %v816, %v818
          %v820 = vrot.slane %v812, %v819
          %v822 = vunpack.c.l.s4 1966171168
          %v823 = vunpack.c.0.s8 %v822
          %v824 = vlaneseq
          %v825 = vshrl.u32 %v824, 7
          %v826 = vsub.s32 %v823, %v825
          %v827 = vrot.slane %v813, %v826
          %v828 = vcombine.low %v820, %v827
          %v830 = vunpack.c.l.s4 1966171168
          %v831 = vunpack.c.0.s8 %v830
          %v832 = vlaneseq
          %v833 = vshrl.u32 %v832, 7
          %v834 = vsub.s32 %v831, %v833
          %v835 = vrot.slane %v828, %v834
          %v837 = vadd.f32 %v783, %v835
          %v838 = vlaneseq
          %vm839 = vcmp.ge.s32.totalorder %v838, 0
          %vm840 = vcmp.lt.s32.totalorder %v838, 512
          %vm841 = vmand %vm839, %vm840
          %842 = vst.msk [vmem:[#allocation3] sm:$0xf] %vm841, %v837
          %v843 = vld [vmem:[#allocation4] sm:$0xf]
          %v844 = vmul.f32 %v736, %v736
          %v845 = vmul.f32 %v738, %v738
          %v846 = vmul.f32 %v777, %v777
          %v847 = vmul.f32 %v779, %v779
          %v848 = vrot.slane %v844, 4
          %v849 = vadd.f32 %v844, %v848
          %v850 = vrot.slane %v849, 2
          %v851 = vadd.f32 %v849, %v850
          %v852 = vrot.slane %v851, 1
          %v853 = vadd.f32 %v851, %v852
          %v854 = vrot.slane %v845, 4
          %v855 = vadd.f32 %v845, %v854
          %v856 = vrot.slane %v855, 2
          %v857 = vadd.f32 %v855, %v856
          %v858 = vrot.slane %v857, 1
          %v859 = vadd.f32 %v857, %v858
          %v860 = vrot.slane %v846, 4
          %v861 = vadd.f32 %v846, %v860
          %v862 = vrot.slane %v861, 2
          %v863 = vadd.f32 %v861, %v862
          %v864 = vrot.slane %v863, 1
          %v865 = vadd.f32 %v863, %v864
          %v866 = vrot.slane %v847, 4
          %v867 = vadd.f32 %v847, %v866
          %v868 = vrot.slane %v867, 2
          %v869 = vadd.f32 %v867, %v868
          %v870 = vrot.slane %v869, 1
          %v871 = vadd.f32 %v869, %v870
          %v876 = vcombine.low %v853, %v859
          %v877 = vcombine.low %v865, %v871
          %v879 = vunpack.c.l.s4 1966171168
          %v880 = vunpack.c.0.s8 %v879
          %v881 = vlaneseq
          %v882 = vshrl.u32 %v881, 7
          %v883 = vsub.s32 %v880, %v882
          %v884 = vrot.slane %v876, %v883
          %v886 = vunpack.c.l.s4 1966171168
          %v887 = vunpack.c.0.s8 %v886
          %v888 = vlaneseq
          %v889 = vshrl.u32 %v888, 7
          %v890 = vsub.s32 %v887, %v889
          %v891 = vrot.slane %v877, %v890
          %v892 = vcombine.low %v884, %v891
          %v894 = vunpack.c.l.s4 1966171168
          %v895 = vunpack.c.0.s8 %v894
          %v896 = vlaneseq
          %v897 = vshrl.u32 %v896, 7
          %v898 = vsub.s32 %v895, %v897
          %v899 = vrot.slane %v892, %v898
          %v901 = vadd.f32 %v843, %v899
          %902 = vst.msk [vmem:[#allocation4] sm:$0xf] %vm841, %v901
          %v903 = vpack.c.bf16 %v736, %v736
          %v904 = vpack.c.bf16 %v738, %v738
          %v905 = vpack.c.bf16 %v777, %v777
          %v906 = vpack.c.bf16 %v779, %v779
          %v911 = vunpack.c.l.b16 %v903
          %v912 = vunpack.c.l.b16 %v904
          %v913 = vunpack.c.l.b16 %v905
          %v914 = vunpack.c.l.b16 %v906
          %v915 = vpack.c.b16 %v912, %v911
          %v916 = vpack.c.b16 %v914, %v913
          %s919 = smul.u32 %s25, 4
          %s920 = smul.addr %s919, 4
          %s921 = scalar_lea.vmem [#allocation2], %s920
          %922 = vst [vmem:[%s921] sm:$0xff] %v915
          %923 = vst [vmem:[%s921 + $0x8] sm:$0xff] %v916
        $region52: #{projection_forward.1} parent=43 // pred_fallthru
          _
        %p924 = scmp.eq.s32.totalorder %s24, 1
        %p925 = pnand %p924, %p295
        %p926 = pneg %p925
        // Predicated region
        $region53: #{projection_forward.1} parent=43 // pred_check
          _
        $region54: #{projection_forward.1} parent=43 // pred_check_branch
          %928 = sbr.rel (%p925) target = $region56
        $region55: #{projection_forward.1} parent=43 // pred_region
          %v929 = vld [vmem:[#allocation3] sm:$0xf]
          %v930 = vmul.f32 %v929, 0.03125
          %v931 = vld [vmem:[#allocation4] sm:$0xf]
          %v932 = vmul.f32 %v931, 0.03125
          %v933 = vmul.f32 %v930, %v930
          %v934 = vsub.f32 %v932, %v933
          %v935 = vld [vmem:[%s2] sm:$0xf]
          %v936 = vadd.f32 %v934, 1e-05
          %v937 = vrsqrt.pop %v936
          %v938 = vmul.f32 %v935, %v937
          %v939 = vlaneseq
          %vm940 = vcmp.ge.s32.totalorder %v939, 0
          %vm941 = vcmp.lt.s32.totalorder %v939, 512
          %vm942 = vmand %vm940, %vm941
          %943 = vst.msk [vmem:[#allocation5] sm:$0xf] %vm942, %v938
          %v944 = vld [vmem:[%s3] sm:$0xf]
          %v945 = vmul.f32 %v930, %v938
          %v946 = vsub.f32 %v944, %v945
          %947 = vst.msk [vmem:[#allocation6] sm:$0xf] %vm942, %v946
        $region56: #{projection_forward.1} parent=43 // pred_fallthru
          _
        // Predicated region
        $region57: #{projection_forward.1} parent=43 // pred_check
          %p948 = pneg %p924
        $region58: #{projection_forward.1} parent=43 // pred_check_branch
          %950 = sbr.rel (%p948) target = $region60
        $region59: #{projection_forward.1} parent=43 // pred_region
          %s951 = smul.u32 %s25, 4
          %s952 = smul.addr %s951, 4
          %s953 = scalar_lea.vmem [#allocation2], %s952
          %v954 = vld [vmem:[%s953] sm:$0xff]
          %v955 = vld [vmem:[%s953 + $0x8] sm:$0xff]
          %v956 = vunpack.c.l.bf16 %v954
          %v957 = vunpack.c.h.bf16 %v954
          %v958 = vunpack.c.l.bf16 %v955
          %v959 = vunpack.c.h.bf16 %v955
          %v960 = vld [vmem:[#allocation5] sm:$0xf]
          %v962 = vlaneseq
          %v963 = vshrl.u32 %v962, 7
          %v964 = vsub.s32 0, %v963
          %v965 = vrot.slane %v960, %v964
          %v966 = vlaneseq
          %v967 = vshrl.u32 %v966, 7
          %v968 = vsub.s32 1, %v967
          %v969 = vrot.slane %v960, %v968
          %v970 = vlaneseq
          %v971 = vshrl.u32 %v970, 7
          %v972 = vsub.s32 2, %v971
          %v973 = vrot.slane %v960, %v972
          %v974 = vlaneseq
          %v975 = vshrl.u32 %v974, 7
          %v976 = vsub.s32 3, %v975
          %v977 = vrot.slane %v960, %v976
          %v982 = vmul.f32 %v956, %v965
          %v983 = vmul.f32 %v957, %v969
          %v984 = vmul.f32 %v958, %v973
          %v985 = vmul.f32 %v959, %v977
          %v986 = vld [vmem:[#allocation6] sm:$0xf]
          %v988 = vlaneseq
          %v989 = vshrl.u32 %v988, 7
          %v990 = vsub.s32 0, %v989
          %v991 = vrot.slane %v986, %v990
          %v992 = vlaneseq
          %v993 = vshrl.u32 %v992, 7
          %v994 = vsub.s32 1, %v993
          %v995 = vrot.slane %v986, %v994
          %v996 = vlaneseq
          %v997 = vshrl.u32 %v996, 7
          %v998 = vsub.s32 2, %v997
          %v999 = vrot.slane %v986, %v998
          %v1000 = vlaneseq
          %v1001 = vshrl.u32 %v1000, 7
          %v1002 = vsub.s32 3, %v1001
          %v1003 = vrot.slane %v986, %v1002
          %v1008 = vadd.f32 %v982, %v991
          %v1009 = vadd.f32 %v983, %v995
          %v1010 = vadd.f32 %v984, %v999
          %v1011 = vadd.f32 %v985, %v1003
          %v1012 = vmax.f32 %v1008, 0.0
          %v1013 = vmax.f32 %v1009, 0.0
          %v1014 = vmax.f32 %v1010, 0.0
          %v1015 = vmax.f32 %v1011, 0.0
          %v1016 = vpack.c.bf16 %v1012, %v1012
          %v1017 = vpack.c.bf16 %v1013, %v1013
          %v1018 = vpack.c.bf16 %v1014, %v1014
          %v1019 = vpack.c.bf16 %v1015, %v1015
          %v1020 = vld [vmem:[%s4] sm:$0xf]
          %v1021 = vld [vmem:[%s4 + $0x4] sm:$0xf]
          %v1022 = vld [vmem:[%s4 + $0x8] sm:$0xf]
          %v1023 = vld [vmem:[%s4 + $0xc] sm:$0xf]
          %v1024 = vld [vmem:[%s4 + $0x10] sm:$0xf]
          %v1025 = vld [vmem:[%s4 + $0x14] sm:$0xf]
          %v1026 = vld [vmem:[%s4 + $0x18] sm:$0xf]
          %v1027 = vld [vmem:[%s4 + $0x1c] sm:$0xf]
          %v1028 = vld [vmem:[%s4 + $0x20] sm:$0xf]
          %v1029 = vld [vmem:[%s4 + $0x24] sm:$0xf]
          %v1030 = vld [vmem:[%s4 + $0x28] sm:$0xf]
          %v1031 = vld [vmem:[%s4 + $0x2c] sm:$0xf]
          %v1032 = vld [vmem:[%s4 + $0x30] sm:$0xf]
          %v1033 = vld [vmem:[%s4 + $0x34] sm:$0xf]
          %v1034 = vld [vmem:[%s4 + $0x38] sm:$0xf]
          %v1035 = vld [vmem:[%s4 + $0x3c] sm:$0xf]
          %v1036 = vld [vmem:[%s4 + $0x40] sm:$0xf]
          %v1037 = vld [vmem:[%s4 + $0x44] sm:$0xf]
          %v1038 = vld [vmem:[%s4 + $0x48] sm:$0xf]
          %v1039 = vld [vmem:[%s4 + $0x4c] sm:$0xf]
          %v1040 = vld [vmem:[%s4 + $0x50] sm:$0xf]
          %v1041 = vld [vmem:[%s4 + $0x54] sm:$0xf]
          %v1042 = vld [vmem:[%s4 + $0x58] sm:$0xf]
          %v1043 = vld [vmem:[%s4 + $0x5c] sm:$0xf]
          %v1044 = vld [vmem:[%s4 + $0x60] sm:$0xf]
          %v1045 = vld [vmem:[%s4 + $0x64] sm:$0xf]
          %v1046 = vld [vmem:[%s4 + $0x68] sm:$0xf]
          %v1047 = vld [vmem:[%s4 + $0x6c] sm:$0xf]
          %v1048 = vld [vmem:[%s4 + $0x70] sm:$0xf]
          %v1049 = vld [vmem:[%s4 + $0x74] sm:$0xf]
          %v1050 = vld [vmem:[%s4 + $0x78] sm:$0xf]
          %v1051 = vld [vmem:[%s4 + $0x7c] sm:$0xf]
          %v1052 = vld [vmem:[%s4 + $0x80] sm:$0xf]
          %v1053 = vld [vmem:[%s4 + $0x84] sm:$0xf]
          %v1054 = vld [vmem:[%s4 + $0x88] sm:$0xf]
          %v1055 = vld [vmem:[%s4 + $0x8c] sm:$0xf]
          %v1056 = vld [vmem:[%s4 + $0x90] sm:$0xf]
          %v1057 = vld [vmem:[%s4 + $0x94] sm:$0xf]
          %v1058 = vld [vmem:[%s4 + $0x98] sm:$0xf]
          %v1059 = vld [vmem:[%s4 + $0x9c] sm:$0xf]
          %v1060 = vld [vmem:[%s4 + $0xa0] sm:$0xf]
          %v1061 = vld [vmem:[%s4 + $0xa4] sm:$0xf]
          %v1062 = vld [vmem:[%s4 + $0xa8] sm:$0xf]
          %v1063 = vld [vmem:[%s4 + $0xac] sm:$0xf]
          %v1064 = vld [vmem:[%s4 + $0xb0] sm:$0xf]
          %v1065 = vld [vmem:[%s4 + $0xb4] sm:$0xf]
          %v1066 = vld [vmem:[%s4 + $0xb8] sm:$0xf]
          %v1067 = vld [vmem:[%s4 + $0xbc] sm:$0xf]
          %v1068 = vld [vmem:[%s4 + $0xc0] sm:$0xf]
          %v1069 = vld [vmem:[%s4 + $0xc4] sm:$0xf]
          %v1070 = vld [vmem:[%s4 + $0xc8] sm:$0xf]
          %v1071 = vld [vmem:[%s4 + $0xcc] sm:$0xf]
          %v1072 = vld [vmem:[%s4 + $0xd0] sm:$0xf]
          %v1073 = vld [vmem:[%s4 + $0xd4] sm:$0xf]
          %v1074 = vld [vmem:[%s4 + $0xd8] sm:$0xf]
          %v1075 = vld [vmem:[%s4 + $0xdc] sm:$0xf]
          %v1076 = vld [vmem:[%s4 + $0xe0] sm:$0xf]
          %v1077 = vld [vmem:[%s4 + $0xe4] sm:$0xf]
          %v1078 = vld [vmem:[%s4 + $0xe8] sm:$0xf]
          %v1079 = vld [vmem:[%s4 + $0xec] sm:$0xf]
          %v1080 = vld [vmem:[%s4 + $0xf0] sm:$0xf]
          %v1081 = vld [vmem:[%s4 + $0xf4] sm:$0xf]
          %v1082 = vld [vmem:[%s4 + $0xf8] sm:$0xf]
          %v1083 = vld [vmem:[%s4 + $0xfc] sm:$0xf]
          %v1084 = vld [vmem:[%s5] sm:$0x1]
          %v1086 = vlaneseq
          %v1087 = vshrl.u32 %v1086, 7
          %v1088 = vsub.s32 0, %v1087
          %v1089 = vrot.slane %v1084, %v1088
          %v1155 = vunpack.c.l.b16 %v1020
          %v1156 = vunpack.c.l.b16 %v1021
          %v1157 = vunpack.c.l.b16 %v1022
          %v1158 = vunpack.c.l.b16 %v1023
          %v1159 = vunpack.c.l.b16 %v1024
          %v1160 = vunpack.c.l.b16 %v1025
          %v1161 = vunpack.c.l.b16 %v1026
          %v1162 = vunpack.c.l.b16 %v1027
          %v1163 = vunpack.c.l.b16 %v1028
          %v1164 = vunpack.c.l.b16 %v1029
          %v1165 = vunpack.c.l.b16 %v1030
          %v1166 = vunpack.c.l.b16 %v1031
          %v1167 = vunpack.c.l.b16 %v1032
          %v1168 = vunpack.c.l.b16 %v1033
          %v1169 = vunpack.c.l.b16 %v1034
          %v1170 = vunpack.c.l.b16 %v1035
          %v1171 = vunpack.c.l.b16 %v1036
          %v1172 = vunpack.c.l.b16 %v1037
          %v1173 = vunpack.c.l.b16 %v1038
          %v1174 = vunpack.c.l.b16 %v1039
          %v1175 = vunpack.c.l.b16 %v1040
          %v1176 = vunpack.c.l.b16 %v1041
          %v1177 = vunpack.c.l.b16 %v1042
          %v1178 = vunpack.c.l.b16 %v1043
          %v1179 = vunpack.c.l.b16 %v1044
          %v1180 = vunpack.c.l.b16 %v1045
          %v1181 = vunpack.c.l.b16 %v1046
          %v1182 = vunpack.c.l.b16 %v1047
          %v1183 = vunpack.c.l.b16 %v1048
          %v1184 = vunpack.c.l.b16 %v1049
          %v1185 = vunpack.c.l.b16 %v1050
          %v1186 = vunpack.c.l.b16 %v1051
          %v1187 = vunpack.c.l.b16 %v1052
          %v1188 = vunpack.c.l.b16 %v1053
          %v1189 = vunpack.c.l.b16 %v1054
          %v1190 = vunpack.c.l.b16 %v1055
          %v1191 = vunpack.c.l.b16 %v1056
          %v1192 = vunpack.c.l.b16 %v1057
          %v1193 = vunpack.c.l.b16 %v1058
          %v1194 = vunpack.c.l.b16 %v1059
          %v1195 = vunpack.c.l.b16 %v1060
          %v1196 = vunpack.c.l.b16 %v1061
          %v1197 = vunpack.c.l.b16 %v1062
          %v1198 = vunpack.c.l.b16 %v1063
          %v1199 = vunpack.c.l.b16 %v1064
          %v1200 = vunpack.c.l.b16 %v1065
          %v1201 = vunpack.c.l.b16 %v1066
          %v1202 = vunpack.c.l.b16 %v1067
          %v1203 = vunpack.c.l.b16 %v1068
          %v1204 = vunpack.c.l.b16 %v1069
          %v1205 = vunpack.c.l.b16 %v1070
          %v1206 = vunpack.c.l.b16 %v1071
          %v1207 = vunpack.c.l.b16 %v1072
          %v1208 = vunpack.c.l.b16 %v1073
          %v1209 = vunpack.c.l.b16 %v1074
          %v1210 = vunpack.c.l.b16 %v1075
          %v1211 = vunpack.c.l.b16 %v1076
          %v1212 = vunpack.c.l.b16 %v1077
          %v1213 = vunpack.c.l.b16 %v1078
          %v1214 = vunpack.c.l.b16 %v1079
          %v1215 = vunpack.c.l.b16 %v1080
          %v1216 = vunpack.c.l.b16 %v1081
          %v1217 = vunpack.c.l.b16 %v1082
          %v1218 = vunpack.c.l.b16 %v1083
          %v1219 = vpack.c.b16 %v1156, %v1155
          %v1220 = vpack.c.b16 %v1158, %v1157
          %v1221 = vpack.c.b16 %v1160, %v1159
          %v1222 = vpack.c.b16 %v1162, %v1161
          %v1223 = vpack.c.b16 %v1164, %v1163
          %v1224 = vpack.c.b16 %v1166, %v1165
          %v1225 = vpack.c.b16 %v1168, %v1167
          %v1226 = vpack.c.b16 %v1170, %v1169
          %v1227 = vpack.c.b16 %v1172, %v1171
          %v1228 = vpack.c.b16 %v1174, %v1173
          %v1229 = vpack.c.b16 %v1176, %v1175
          %v1230 = vpack.c.b16 %v1178, %v1177
          %v1231 = vpack.c.b16 %v1180, %v1179
          %v1232 = vpack.c.b16 %v1182, %v1181
          %v1233 = vpack.c.b16 %v1184, %v1183
          %v1234 = vpack.c.b16 %v1186, %v1185
          %v1235 = vpack.c.b16 %v1188, %v1187
          %v1236 = vpack.c.b16 %v1190, %v1189
          %v1237 = vpack.c.b16 %v1192, %v1191
          %v1238 = vpack.c.b16 %v1194, %v1193
          %v1239 = vpack.c.b16 %v1196, %v1195
          %v1240 = vpack.c.b16 %v1198, %v1197
          %v1241 = vpack.c.b16 %v1200, %v1199
          %v1242 = vpack.c.b16 %v1202, %v1201
          %v1243 = vpack.c.b16 %v1204, %v1203
          %v1244 = vpack.c.b16 %v1206, %v1205
          %v1245 = vpack.c.b16 %v1208, %v1207
          %v1246 = vpack.c.b16 %v1210, %v1209
          %v1247 = vpack.c.b16 %v1212, %v1211
          %v1248 = vpack.c.b16 %v1214, %v1213
          %v1249 = vpack.c.b16 %v1216, %v1215
          %v1250 = vpack.c.b16 %v1218, %v1217
          %1283 = vmatprep.subr.bf16.mxu0 0
          %1284 = vmatpush1.bf16.msra.mxu0 %v1219
          %1285 = vmatprep.subr.bf16.mxu0 0
          %1286 = vmatpush1.bf16.msra.mxu0 %v1220
          %1287 = vmatprep.subr.bf16.mxu0 0
          %1288 = vmatpush1.bf16.msra.mxu0 %v1221
          %1289 = vmatprep.subr.bf16.mxu0 0
          %1290 = vmatpush1.bf16.msra.mxu0 %v1222
          %1291 = vmatprep.subr.bf16.mxu0 0
          %1292 = vmatpush1.bf16.msra.mxu0 %v1223
          %1293 = vmatprep.subr.bf16.mxu0 0
          %1294 = vmatpush1.bf16.msra.mxu0 %v1224
          %1295 = vmatprep.subr.bf16.mxu0 0
          %1296 = vmatpush1.bf16.msra.mxu0 %v1225
          %1297 = vmatprep.subr.bf16.mxu0 0
          %1298 = vmatpush1.bf16.msra.mxu0 %v1226
          %1299 = vmatprep.subr.bf16.mxu0 0
          %1300 = vmatpush1.bf16.msra.mxu0 %v1227
          %1301 = vmatprep.subr.bf16.mxu0 0
          %1302 = vmatpush1.bf16.msra.mxu0 %v1228
          %1303 = vmatprep.subr.bf16.mxu0 0
          %1304 = vmatpush1.bf16.msra.mxu0 %v1229
          %1305 = vmatprep.subr.bf16.mxu0 0
          %1306 = vmatpush1.bf16.msra.mxu0 %v1230
          %1307 = vmatprep.subr.bf16.mxu0 0
          %1308 = vmatpush1.bf16.msra.mxu0 %v1231
          %1309 = vmatprep.subr.bf16.mxu0 0
          %1310 = vmatpush1.bf16.msra.mxu0 %v1232
          %1311 = vmatprep.subr.bf16.mxu0 0
          %1312 = vmatpush1.bf16.msra.mxu0 %v1233
          %1313 = vmatprep.subr.bf16.mxu0 0
          %1314 = vmatpush1.bf16.msra.mxu0 %v1234
          %1315 = vmatprep.mubr.bf16.mxu0 %v1017
          %1316 = vmatmul.mubr.bf16.gmra.mrb[0].mxu0 %v1016
          %v1317 = vpop.f32.mrb[0].mxu0
          %v1318 = vadd.f32 %v1089, %v1317
          %v1319 = vpop.f32.mrb[0].mxu0
          %v1320 = vpop.f32.mrb[0].mxu0
          %v1321 = vpop.f32.mrb[0].mxu0
          %1322 = vdwg.mxu0
          %1323 = vmatprep.subr.bf16.mxu0 0
          %1324 = vmatpush1.bf16.msra.mxu0 %v1235
          %1325 = vmatprep.subr.bf16.mxu0 0
          %1326 = vmatpush1.bf16.msra.mxu0 %v1236
          %1327 = vmatprep.subr.bf16.mxu0 0
          %1328 = vmatpush1.bf16.msra.mxu0 %v1237
          %1329 = vmatprep.subr.bf16.mxu0 0
          %1330 = vmatpush1.bf16.msra.mxu0 %v1238
          %1331 = vmatprep.subr.bf16.mxu0 0
          %1332 = vmatpush1.bf16.msra.mxu0 %v1239
          %1333 = vmatprep.subr.bf16.mxu0 0
          %1334 = vmatpush1.bf16.msra.mxu0 %v1240
          %1335 = vmatprep.subr.bf16.mxu0 0
          %1336 = vmatpush1.bf16.msra.mxu0 %v1241
          %1337 = vmatprep.subr.bf16.mxu0 0
          %1338 = vmatpush1.bf16.msra.mxu0 %v1242
          %1339 = vmatprep.subr.bf16.mxu0 0
          %1340 = vmatpush1.bf16.msra.mxu0 %v1243
          %1341 = vmatprep.subr.bf16.mxu0 0
          %1342 = vmatpush1.bf16.msra.mxu0 %v1244
          %1343 = vmatprep.subr.bf16.mxu0 0
          %1344 = vmatpush1.bf16.msra.mxu0 %v1245
          %1345 = vmatprep.subr.bf16.mxu0 0
          %1346 = vmatpush1.bf16.msra.mxu0 %v1246
          %1347 = vmatprep.subr.bf16.mxu0 0
          %1348 = vmatpush1.bf16.msra.mxu0 %v1247
          %1349 = vmatprep.subr.bf16.mxu0 0
          %1350 = vmatpush1.bf16.msra.mxu0 %v1248
          %1351 = vmatprep.subr.bf16.mxu0 0
          %1352 = vmatpush1.bf16.msra.mxu0 %v1249
          %1353 = vmatprep.subr.bf16.mxu0 0
          %1354 = vmatpush1.bf16.msra.mxu0 %v1250
          %1355 = vmatprep.mubr.bf16.mxu0 %v1019
          %1356 = vmatmul.mubr.bf16.gmra.mrb[0].mxu0 %v1018
          %v1357 = vpop.f32.mrb[0].mxu0
          %v1358 = vadd.f32 %v1318, %v1357
          %v1359 = vpop.f32.mrb[0].mxu0
          %v1360 = vpop.f32.mrb[0].mxu0
          %v1361 = vpop.f32.mrb[0].mxu0
          %1362 = vdwg.mxu0
          %v1363 = vmul.f32 %v1358, %v1358
          %1364 = vadd.xlane.f32.xlu0 %v1363
          %v1365 = vpop.xlane.xlu0 %1364
          %v1366 = vmax.f32 %v1365, 1e-24
          %v1367 = vrsqrt.pop %v1366
          %v1368 = vmul.f32 %v1358, %v1367
          %1369 = vst [vmem:[%s278] sm:$0xff] %v1368
        $region60: #{projection_forward.1} parent=43 // pred_fallthru
          _
        %s1370 = sand.u32 %s181, 1
        %s1371 = scalar_lea.sflag [#allocation8], %s1370
        %s1372 = sand.u32 %s181, 1
        %s1373 = smul.addr %s1372, 8
        %s1374 = scalar_lea.vmem [#allocation7], %s1373
        // Predicated region
        $region61: #{projection_forward.1} parent=43 // pred_check
          %p1375 = pneg %p191
        $region62: #{projection_forward.1} parent=43 // pred_check_branch
          %1377 = sbr.rel (%p1375) target = $region64
        $region63: #{projection_forward.1} parent=43 // pred_region
          %s1378 = smul.u32 %s25, %s24
          %s1380 = ssub.s32 128, 128
          %1381 = vsyncadd %s1371, %s1380
          %s1382 = smul.addr %s1378, 128
          %s1383 = scalar_lea.hbm %s6, %s1382
          %s1385 = sshll.u32 %s1374, 4
          %s1386 = int_to_ptr.vmem [resolvable:$true] %s1385
          %1388 = dma.vmem_to_hbm [thread:$0]  %s1386, 128, %s1383, %s1371
        $region64: #{projection_forward.1} parent=43 // pred_fallthru
          _
      $region44: #{projection_forward.1} parent=5 // pred_fallthru
        _
      %p1389 = scmp.le.s32.totalorder 2, %s15
      // Predicated region
      $region65: #{projection_forward.1} parent=5 // pred_check
        %p1390 = pneg %p1389
      $region66: #{projection_forward.1} parent=5 // pred_check_branch
        %1392 = sbr.rel (%p1390) target = $region68
      $region67: #{projection_forward.1} parent=5 // pred_region
        %s1393 = ssub.s32 %s15, 2
        // Predicated region
        $region69: #{projection_forward.1} parent=67 // pred_check
          %p1394 = pneg %p197
        $region70: #{projection_forward.1} parent=67 // pred_check_branch
          %1396 = sbr.rel (%p1394) target = $region72
        $region71: #{projection_forward.1} parent=67 // pred_region
          %s1397 = sand.u32 %s182, 1
          %s1398 = scalar_lea.sflag [#allocation8], %s1397
          %s1399 = sand.u32 %s182, 1
          %s1400 = smul.addr %s1399, 8
          %s1401 = scalar_lea.vmem [#allocation7], %s1400
          %1402 = dma.done %s1398, 128
        $region72: #{projection_forward.1} parent=67 // pred_fallthru
          _
      $region68: #{projection_forward.1} parent=5 // pred_fallthru
        _
    $region6: #{projection_forward.1} parent=1 // loop_footer
      %s19 = sadd.s32 1, %s15
    $region7: #{projection_forward.1} parent=1 // loop_footer_branch
      %14 = sbr.rel target = $region3
    $region8: #{projection_forward.1} parent=1 // loop_exit
      _
    %1403 = vsyncpa [#allocation8], 1
    %s1404 = scalar_lea.sflag [#allocation8], 1
    %1405 = vsyncpa %s1404, 1

</llo_original>
